<compile_context>
chip_gen: v5e
topology: v5e:2x2
jax: 0.10.0
libtpu: 0.0.40
codegen_flags: <defaults>
</compile_context>

<pallas_src>
import functools

import jax
import jax.numpy as jnp
from jax import lax
from jax.experimental import pallas as pl
from jax.experimental.pallas import tpu as pltpu


# ----------------------------------------------------------------------------
# Pallas kernel: multi-perspective matching (the `emoji2word` method), fused
# over both (query, context) directions.
# ----------------------------------------------------------------------------

_EPS_SQ = 1e-12    # per-factor clamp on squared norms (each norm factor >= 1e-6)
_EPS_SUM = 1e-8    # clamp on the signed attentive weight sum


def _dotT(x, y):
    # Contract the last dims of both operands: (M, D) x (N, D) -> (M, N).
    return lax.dot_general(x, y, (((1,), (1,)), ((), ())),
                           preferred_element_type=jnp.float32)


def _inv_norm_factor(sq):
    # rsqrt of one squared-norm factor (EUP slot), clamped away from zero.
    return lax.rsqrt(jnp.maximum(sq, _EPS_SQ))


def _safe_recip_signed(s):
    # 1/s for a signed sum; reference has no clamp -- this only changes
    # degenerate ~0 sums from Inf to a large finite value.
    s_safe = jnp.where(jnp.abs(s) < _EPS_SUM,
                       jnp.where(s >= 0.0, _EPS_SUM, -_EPS_SUM), s)
    return 1.0 / s_safe


def _match_direction(a, b, wext, hh, p, out_ref):
    """Matching features for query `a` (LA, Hp) against context `b` (LB, Hp).

    wext: (8P+2, Hp) block-diagonal SQUARED perspective weights
          [W12; W34; W56; W78; half-selector rows], lane-padded with zeros.
    Writes a lane-dense (LA, Fpad) feature block into out_ref[0].
    """
    LA, Hp = a.shape
    LB = b.shape[0]
    P = p
    P2 = 2 * P

    lane = lax.broadcasted_iota(jnp.int32, (1, Hp), 1)
    fwd_lane = lane < hh                                     # forward-half lanes

    # ---- in-kernel time reversal of the query's backward half ----------------
    # (reference reads A[L-1-pos, Hh:]); small reverse-permutation matmul (MXU).
    row_i = lax.broadcasted_iota(jnp.int32, (LA, LA), 0)
    col_i = lax.broadcasted_iota(jnp.int32, (LA, LA), 1)
    rev_mat = (col_i == (LA - 1) - row_i).astype(jnp.float32)
    a_rev = jnp.dot(rev_mat, a, preferred_element_type=jnp.float32)
    aq = jnp.where(fwd_lane, a, a_rev)                       # effective query

    # masked context halves (full lane width -> no narrow lane slices)
    b_for = jnp.where(fwd_lane, b, 0.0)
    b_bac = jnp.where(fwd_lane, 0.0, b)

    # final hidden states of the context: [b_forward[-1] | b_backward[0]]
    final_cat = jnp.where(fwd_lane, b[LB - 1:LB, :], b[0:1, :])      # (1, Hp)

    # ---- shared per-perspective squared norms (one matmul per side) ----------
    na_all = _dotT(aq * aq, wext)                            # (LA, 8P+2)
    nbT = _dotT(wext, b * b)                                 # (8P+2, LB)

    # ---- plain cosine similarity (factored rsqrt: LA+LB EUP ops per half) ----
    inv_na_for = _inv_norm_factor(na_all[:, 8 * P:8 * P + 1])        # (LA, 1)
    inv_na_bac = _inv_norm_factor(na_all[:, 8 * P + 1:8 * P + 2])
    inv_nb_for = _inv_norm_factor(nbT[8 * P:8 * P + 1, :])           # (1, LB)
    inv_nb_bac = _inv_norm_factor(nbT[8 * P + 1:8 * P + 2, :])
    simi_for = _dotT(aq, b_for) * inv_na_for * inv_nb_for            # (LA, LB)
    simi_bac = _dotT(aq, b_bac) * inv_na_bac * inv_nb_bac

    # ---- (2) max-pooling matching: factored rsqrt around the LB-max ----------
    w_max = wext[P2:2 * P2, :]                                       # (2P, Hp)
    a_w = (aq[:, None, :] * w_max[None, :, :]).reshape(LA * P2, Hp)
    num_max = _dotT(a_w, b).reshape(LA, P2, LB)                      # (LA, 2P, LB)
    inv_nb_max = _inv_norm_factor(nbT[P2:2 * P2, :])                 # (2P, LB)
    inv_na_max = _inv_norm_factor(na_all[:, P2:2 * P2])              # (LA, 2P)
    m_max = jnp.max(num_max * inv_nb_max[None, :, :], axis=2) * inv_na_max

    # ---- (3)+(4) attentive & max-attentive context vectors --------------------
    wnorm_for = simi_for * _safe_recip_signed(
        jnp.sum(simi_for, axis=1, keepdims=True))
    wnorm_bac = simi_bac * _safe_recip_signed(
        jnp.sum(simi_bac, axis=1, keepdims=True))

    iota_lb = lax.broadcasted_iota(jnp.int32, (LA, LB), 1)

    def onehot_argmax(simi):
        mx = jnp.max(simi, axis=1, keepdims=True)
        idx = jnp.min(jnp.where(simi >= mx, iota_lb, LB), axis=1, keepdims=True)
        return (iota_lb == idx).astype(jnp.float32)

    coefs_for = jnp.concatenate([wnorm_for, onehot_argmax(simi_for)], axis=0)
    coefs_bac = jnp.concatenate([wnorm_bac, onehot_argmax(simi_bac)], axis=0)
    mixed = (jnp.dot(coefs_for, b_for, preferred_element_type=jnp.float32)
             + jnp.dot(coefs_bac, b_bac, preferred_element_type=jnp.float32))
    weighted_cat = mixed[:LA]                # (LA, Hp): [weighted_for | weighted_bac]
    maxvec_cat = mixed[LA:]                  # (LA, Hp): [maxvec_for   | maxvec_bac]

    # ---- (1)(3)(4) full / attentive / max-attentive fm features --------------
    w_full = wext[0:P2, :]
    w_att = wext[2 * P2:3 * P2, :]
    w_matt = wext[3 * P2:4 * P2, :]

    nb_full = _dotT(final_cat * final_cat, w_full)                   # (1, 2P)
    m_full = (_dotT(aq * final_cat, w_full)
              * _inv_norm_factor(na_all[:, 0:P2])
              * _inv_norm_factor(nb_full))
    # context norms vary per query row here -> clamped product form (1 rsqrt).
    m_att = _dotT(aq * weighted_cat, w_att) * lax.rsqrt(jnp.maximum(
        na_all[:, 2 * P2:3 * P2] * _dotT(weighted_cat * weighted_cat, w_att),
        _EPS_SQ * _EPS_SQ))
    m_matt = _dotT(aq * maxvec_cat, w_matt) * lax.rsqrt(jnp.maximum(
        na_all[:, 3 * P2:4 * P2] * _dotT(maxvec_cat * maxvec_cat, w_matt),
        _EPS_SQ * _EPS_SQ))

    # Block-diagonal weight layout yields exactly the reference column order:
    # [full_for, full_bac, max_for, max_bac, att_for, att_bac, maxatt_for, maxatt_bac]
    feats = jnp.concatenate([m_full, m_max, m_att, m_matt], axis=1)  # (LA, 8P)
    fpad = out_ref.shape[2] - 8 * P
    if fpad:
        feats = jnp.concatenate([feats, jnp.zeros((LA, fpad), jnp.float32)], axis=1)
    out_ref[0] = feats                                               # lane-dense store


def match_pair_kernel(hh, p, a_ref, b_ref, w_ref, out_a_ref, out_b_ref):
    wext = w_ref[...]
    a = a_ref[0]                   # (LA, Hp) words hidden states (this batch elem)
    b = b_ref[0]                   # (LB, Hp) emoji hidden states
    _match_direction(a, b, wext, hh, p, out_a_ref)   # emoji2word(A, B)
    _match_direction(b, a, wext, hh, p, out_b_ref)   # emoji2word(B, A)


def build_wext(Ws):
    """Square + block-diagonal stack of the 8 perspective matrices (+ selector rows)."""
    P, Hh = Ws[0].shape
    z = jnp.zeros((P, Hh), jnp.float32)

    def bd(wa, wb):
        return jnp.concatenate([
            jnp.concatenate([wa * wa, z], axis=1),
            jnp.concatenate([z, wb * wb], axis=1)], axis=0)          # (2P, 2Hh)

    sel = jnp.concatenate([
        jnp.concatenate([jnp.ones((1, Hh), jnp.float32),
                         jnp.zeros((1, Hh), jnp.float32)], axis=1),
        jnp.concatenate([jnp.zeros((1, Hh), jnp.float32),
                         jnp.ones((1, Hh), jnp.float32)], axis=1)],
        axis=0)                                                      # (2, 2Hh)
    return jnp.concatenate([bd(Ws[0], Ws[1]), bd(Ws[2], Ws[3]),
                            bd(Ws[4], Ws[5]), bd(Ws[6], Ws[7]), sel], axis=0)


def match_pair(A, B, wext, perspective_dim):
    """Fused emoji2word in both directions.

    Returns (emoji2word(A, B), emoji2word(B, A)) = ((Bsz,LA,8P), (Bsz,LB,8P)).
    """
    Bsz, LA, H = A.shape
    LB = B.shape[1]
    Hh = H // 2
    P = perspective_dim
    Hp = pl.cdiv(H, 128) * 128                 # lane-dense contraction dim
    Fpad = pl.cdiv(8 * P, 128) * 128           # lane-dense output width

    def pad_lanes(x):
        if x.shape[-1] == Hp:
            return x
        return jnp.pad(x, [(0, 0)] * (x.ndim - 1) + [(0, Hp - x.shape[-1])])

    A_p, B_p, w_p = pad_lanes(A), pad_lanes(B), pad_lanes(wext)
    kern = functools.partial(match_pair_kernel, Hh, P)

    out_a, out_b = pl.pallas_call(
        kern,
        out_shape=(jax.ShapeDtypeStruct((Bsz, LA, Fpad), jnp.float32),
                   jax.ShapeDtypeStruct((Bsz, LB, Fpad), jnp.float32)),
        grid=(Bsz,),
        in_specs=[pl.BlockSpec((1, LA, Hp), lambda i: (i, 0, 0)),
                  pl.BlockSpec((1, LB, Hp), lambda i: (i, 0, 0)),
                  pl.BlockSpec((8 * P + 2, Hp), lambda i: (0, 0))],
        out_specs=(pl.BlockSpec((1, LA, Fpad), lambda i: (i, 0, 0)),
                   pl.BlockSpec((1, LB, Fpad), lambda i: (i, 0, 0))),
        compiler_params=pltpu.CompilerParams(dimension_semantics=("parallel",)),
    )(A_p, B_p, w_p)
    # TODO(synk): for large LA/LB add an LA-tile grid axis (parallel) and chunk the
    # perspective dim of the max-pool in a fori_loop to bound VMEM on v7x; at real
    # model sizes also feed the MXU bf16 operands with f32 accumulation.
    return out_a[:, :, :8 * P], out_b[:, :, :8 * P]


# ----------------------------------------------------------------------------
# Output head (plain XLA: work is far below pallas_call overhead)
# ----------------------------------------------------------------------------

def linear_sigmoid(x, w, b):
    return jax.nn.sigmoid(x @ w.T + b)


# ----------------------------------------------------------------------------
# Plain-JAX glue: embedding lookup + bidirectional LSTMs (PyTorch gate order)
# ----------------------------------------------------------------------------
# TODO(synk): the sequential LSTM recurrence stays in jax.lax.scan (plain JAX);
# the multi-perspective matching layer is the Pallas kernel.

def lstm_dir(x, w_ih, w_hh, b_ih, b_hh, reverse):
    Bsz, L, _ = x.shape
    Hh = w_hh.shape[1]
    xs = jnp.swapaxes(x, 0, 1)                       # (L, B, D)
    if reverse:
        xs = xs[::-1]

    def step(carry, xt):
        h, c = carry
        gates = xt @ w_ih.T + b_ih + h @ w_hh.T + b_hh
        i, f, g, o = jnp.split(gates, 4, axis=1)     # PyTorch order: i, f, g, o
        i = jax.nn.sigmoid(i)
        f = jax.nn.sigmoid(f)
        g = jnp.tanh(g)
        o = jax.nn.sigmoid(o)
        c = f * c + i * g
        h = o * jnp.tanh(c)
        return (h, c), h

    init = (jnp.zeros((Bsz, Hh), x.dtype), jnp.zeros((Bsz, Hh), x.dtype))
    (h_last, _), hs = lax.scan(step, init, xs)
    if reverse:
        hs = hs[::-1]
    return jnp.swapaxes(hs, 0, 1), h_last            # (B, L, Hh), (B, Hh)


def bilstm(x, p):
    of, hf = lstm_dir(x, p['W_ih_f'], p['W_hh_f'], p['b_ih_f'], p['b_hh_f'], False)
    ob, hb = lstm_dir(x, p['W_ih_b'], p['W_hh_b'], p['b_ih_b'], p['b_hh_b'], True)
    return jnp.concatenate([of, ob], axis=-1), (hf, hb)


def init_lstm_params(key, in_dim, Hh, scale=0.1):
    ks = jax.random.split(key, 8)
    return {
        'W_ih_f': jax.random.normal(ks[0], (4 * Hh, in_dim), jnp.float32) * scale,
        'W_hh_f': jax.random.normal(ks[1], (4 * Hh, Hh), jnp.float32) * scale,
        'b_ih_f': jax.random.normal(ks[2], (4 * Hh,), jnp.float32) * scale,
        'b_hh_f': jax.random.normal(ks[3], (4 * Hh,), jnp.float32) * scale,
        'W_ih_b': jax.random.normal(ks[4], (4 * Hh, in_dim), jnp.float32) * scale,
        'W_hh_b': jax.random.normal(ks[5], (4 * Hh, Hh), jnp.float32) * scale,
        'b_ih_b': jax.random.normal(ks[6], (4 * Hh,), jnp.float32) * scale,
        'b_hh_b': jax.random.normal(ks[7], (4 * Hh,), jnp.float32) * scale,
    }


# ----------------------------------------------------------------------------
# Full bi_mpm forward
# ----------------------------------------------------------------------------

def bi_mpm_forward(words, emojis, params):
    emb = params['embedding']
    word_embeddings = emb[words]                     # (B, Lw, E)  frozen embedding
    emoji_embeddings = emb[emojis]                   # (B, Le, E)

    wordos, _ = bilstm(word_embeddings, params['word_lstm'])     # (B, Lw, H)
    emojios, _ = bilstm(emoji_embeddings, params['emoji_lstm'])  # (B, Le, H)

    P = params['Ws'][0].shape[0]
    wext = build_wext(params['Ws'])                  # squared + stacked once (outside kernel)

    # Fused Pallas kernel: both matching directions in one launch.
    words_new_seq, emoji_new_seq = match_pair(wordos, emojios, wext, P)

    # TODO(synk): the reference declares word_lstm2/emoji_lstm2 with input size
    # perspective_dim*2, but emoji2word emits 8*perspective_dim features per step
    # (a shape bug in the original); second BiLSTMs are sized at 8*perspective_dim.
    _, (hwf, hwb) = bilstm(words_new_seq, params['word_lstm2'])
    _, (hef, heb) = bilstm(emoji_new_seq, params['emoji_lstm2'])

    words_final_embedding = jnp.concatenate([hwf, hwb], axis=1)   # (B, H)
    emoji_final_embedding = jnp.concatenate([hef, heb], axis=1)   # (B, H)
    pair_embedding = jnp.concatenate(
        [words_final_embedding, emoji_final_embedding], axis=1)   # (B, 2H)

    return linear_sigmoid(pair_embedding, params['W_out'], params['b_out'])


# ----------------------------------------------------------------------------
# Demo
# ----------------------------------------------------------------------------

if __name__ == "__main__":
    key = jax.random.PRNGKey(0)

    vocab_size = 50
    embedding_dim = 16
    hidden_dim = 32
    Hh = hidden_dim // 2
    perspective_dim = 4
    out_dim = 2
    batch = 2
    Lw = 8                      # word sequence length
    Le = 6                      # emoji sequence length

    keys = jax.random.split(key, 18)
    params = {
        'embedding': jax.random.normal(keys[0], (vocab_size, embedding_dim), jnp.float32),
        'word_lstm': init_lstm_params(keys[1], embedding_dim, Hh),
        'emoji_lstm': init_lstm_params(keys[2], embedding_dim, Hh),
        'word_lstm2': init_lstm_params(keys[3], 8 * perspective_dim, Hh),
        'emoji_lstm2': init_lstm_params(keys[4], 8 * perspective_dim, Hh),
        'Ws': [jax.random.normal(keys[5 + i], (perspective_dim, Hh), jnp.float32)
               for i in range(8)],
        'W_out': jax.random.normal(keys[13], (out_dim, 2 * hidden_dim), jnp.float32) * 0.1,
        'b_out': jax.random.normal(keys[14], (out_dim,), jnp.float32) * 0.1,
    }

    words = jax.random.randint(keys[15], (batch, Lw), 0, vocab_size, dtype=jnp.int32)
    emojis = jax.random.randint(keys[16], (batch, Le), 0, vocab_size, dtype=jnp.int32)

    out = jax.jit(bi_mpm_forward)(words, emojis, params)
    out = jax.block_until_ready(out)

    assert out.shape == (batch, out_dim), out.shape
    assert bool(jnp.all(jnp.isfinite(out)))
    assert bool(jnp.all((out >= 0.0) & (out <= 1.0)))
    print("KERNEL_OK")
</pallas_src>

<mosaic_0001>
module attributes {stable_mosaic.version = 11 : i64} {
  func.func @match_pair_kernel(%arg0: i32, %arg1: memref<1x8x128xf32, #tpu.memory_space<vmem>>, %arg2: memref<1x6x128xf32, #tpu.memory_space<vmem>>, %arg3: memref<34x128xf32, #tpu.memory_space<vmem>>, %arg4: memref<1x8x128xf32, #tpu.memory_space<vmem>>, %arg5: memref<1x6x128xf32, #tpu.memory_space<vmem>>) attributes {dimension_semantics = [#tpu.dimension_semantics<parallel>], iteration_bounds = array<i64: 2>, scalar_prefetch = 0 : i64, scratch_operands = 0 : i64, tpu.core_type = #tpu.core_type<tc>, window_params = [{transform_indices = @transform_0, window_bounds = array<i64: 1, 8, 128>}, {transform_indices = @transform_1, window_bounds = array<i64: 1, 6, 128>}, {pipeline_mode = #tpu.pipeline_mode<synchronous>, transform_indices = @transform_2, window_bounds = array<i64: 34, 128>}, {transform_indices = @transform_3, window_bounds = array<i64: 1, 8, 128>}, {transform_indices = @transform_4, window_bounds = array<i64: 1, 6, 128>}]} {
    %c0 = arith.constant 0 : index
    %c0_0 = arith.constant 0 : index
    %0 = vector.load %arg3[%c0, %c0_0] : memref<34x128xf32, #tpu.memory_space<vmem>>, vector<34x128xf32>
    %c0_1 = arith.constant 0 : index
    %c0_2 = arith.constant 0 : index
    %c0_3 = arith.constant 0 : index
    %1 = vector.load %arg1[%c0_1, %c0_2, %c0_3] : memref<1x8x128xf32, #tpu.memory_space<vmem>>, vector<1x8x128xf32>
    %2 = vector.shape_cast %1 : vector<1x8x128xf32> to vector<8x128xf32>
    %c0_4 = arith.constant 0 : index
    %c0_5 = arith.constant 0 : index
    %c0_6 = arith.constant 0 : index
    %3 = vector.load %arg2[%c0_4, %c0_5, %c0_6] : memref<1x6x128xf32, #tpu.memory_space<vmem>>, vector<1x6x128xf32>
    %4 = vector.shape_cast %3 : vector<1x6x128xf32> to vector<6x128xf32>
    %5 = tpu.iota {dimensions = array<i32: 1>} : vector<1x128xi32>
    %c16_i32 = arith.constant 16 : i32
    %6 = vector.broadcast %c16_i32 : i32 to vector<1x128xi32>
    %7 = arith.cmpi slt, %5, %6 : vector<1x128xi32>
    %8 = tpu.iota {dimensions = array<i32: 0>} : vector<8x8xi32>
    %9 = tpu.iota {dimensions = array<i32: 1>} : vector<8x8xi32>
    %c7_i32 = arith.constant 7 : i32
    %10 = vector.broadcast %c7_i32 : i32 to vector<8x8xi32>
    %11 = arith.subi %10, %8 : vector<8x8xi32>
    %12 = arith.cmpi eq, %9, %11 : vector<8x8xi32>
    %13 = arith.extui %12 : vector<8x8xi1> to vector<8x8xi32>
    %14 = arith.sitofp %13 : vector<8x8xi32> to vector<8x8xf32>
    %cst = arith.constant dense<0.000000e+00> : vector<8x128xf32>
    %15 = tpu.matmul %14, %2, %cst {dimension_numbers = #tpu.dot_dimension_numbers<[1], [0], [0], [1], [0, 0, 1, 1], [], []>} : vector<8x8xf32>, vector<8x128xf32>, vector<8x128xf32> -> vector<8x128xf32>
    %16 = vector.shape_cast %7 : vector<1x128xi1> to vector<1x128xi1>
    %17 = vector.broadcast %16 : vector<1x128xi1> to vector<8x128xi1>
    %18 = arith.select %17, %2, %15 : vector<8x128xi1>, vector<8x128xf32>
    %cst_7 = arith.constant 0.000000e+00 : f32
    %19 = vector.shape_cast %7 : vector<1x128xi1> to vector<1x128xi1>
    %20 = vector.broadcast %19 : vector<1x128xi1> to vector<6x128xi1>
    %21 = vector.broadcast %cst_7 : f32 to vector<6x128xf32>
    %22 = arith.select %20, %4, %21 : vector<6x128xi1>, vector<6x128xf32>
    %cst_8 = arith.constant 0.000000e+00 : f32
    %23 = vector.shape_cast %7 : vector<1x128xi1> to vector<1x128xi1>
    %24 = vector.broadcast %23 : vector<1x128xi1> to vector<6x128xi1>
    %25 = vector.broadcast %cst_8 : f32 to vector<6x128xf32>
    %26 = arith.select %24, %25, %4 : vector<6x128xi1>, vector<6x128xf32>
    %27 = vector.extract_strided_slice %4 {offsets = [5, 0], sizes = [1, 128], strides = [1, 1]} : vector<6x128xf32> to vector<1x128xf32>
    %28 = vector.extract_strided_slice %4 {offsets = [0, 0], sizes = [1, 128], strides = [1, 1]} : vector<6x128xf32> to vector<1x128xf32>
    %29 = arith.select %7, %27, %28 : vector<1x128xi1>, vector<1x128xf32>
    %30 = arith.mulf %18, %18 : vector<8x128xf32>
    %cst_9 = arith.constant dense<0.000000e+00> : vector<8x34xf32>
    %31 = tpu.matmul %30, %0, %cst_9 {dimension_numbers = #tpu.dot_dimension_numbers<[1], [1], [0], [0], [0, 0, 1, 0], [], []>} : vector<8x128xf32>, vector<34x128xf32>, vector<8x34xf32> -> vector<8x34xf32>
    %32 = arith.mulf %4, %4 : vector<6x128xf32>
    %cst_10 = arith.constant dense<0.000000e+00> : vector<34x6xf32>
    %33 = tpu.matmul %0, %32, %cst_10 {dimension_numbers = #tpu.dot_dimension_numbers<[1], [1], [0], [0], [0, 0, 1, 0], [], []>} : vector<34x128xf32>, vector<6x128xf32>, vector<34x6xf32> -> vector<34x6xf32>
    %34 = vector.extract_strided_slice %31 {offsets = [0, 32], sizes = [8, 1], strides = [1, 1]} : vector<8x34xf32> to vector<8x1xf32>
    %cst_11 = arith.constant 9.99999996E-13 : f32
    %35 = vector.broadcast %cst_11 : f32 to vector<8x1xf32>
    %36 = arith.maximumf %34, %35 : vector<8x1xf32>
    %37 = math.rsqrt %36 : vector<8x1xf32>
    %38 = vector.extract_strided_slice %31 {offsets = [0, 33], sizes = [8, 1], strides = [1, 1]} : vector<8x34xf32> to vector<8x1xf32>
    %cst_12 = arith.constant 9.99999996E-13 : f32
    %39 = vector.broadcast %cst_12 : f32 to vector<8x1xf32>
    %40 = arith.maximumf %38, %39 : vector<8x1xf32>
    %41 = math.rsqrt %40 : vector<8x1xf32>
    %42 = vector.extract_strided_slice %33 {offsets = [32, 0], sizes = [1, 6], strides = [1, 1]} : vector<34x6xf32> to vector<1x6xf32>
    %cst_13 = arith.constant 9.99999996E-13 : f32
    %43 = vector.broadcast %cst_13 : f32 to vector<1x6xf32>
    %44 = arith.maximumf %42, %43 : vector<1x6xf32>
    %45 = math.rsqrt %44 : vector<1x6xf32>
    %46 = vector.extract_strided_slice %33 {offsets = [33, 0], sizes = [1, 6], strides = [1, 1]} : vector<34x6xf32> to vector<1x6xf32>
    %cst_14 = arith.constant 9.99999996E-13 : f32
    %47 = vector.broadcast %cst_14 : f32 to vector<1x6xf32>
    %48 = arith.maximumf %46, %47 : vector<1x6xf32>
    %49 = math.rsqrt %48 : vector<1x6xf32>
    %cst_15 = arith.constant dense<0.000000e+00> : vector<8x6xf32>
    %50 = tpu.matmul %18, %22, %cst_15 {dimension_numbers = #tpu.dot_dimension_numbers<[1], [1], [0], [0], [0, 0, 1, 0], [], []>} : vector<8x128xf32>, vector<6x128xf32>, vector<8x6xf32> -> vector<8x6xf32>
    %51 = vector.broadcast %37 : vector<8x1xf32> to vector<8x6xf32>
    %52 = arith.mulf %50, %51 : vector<8x6xf32>
    %53 = vector.broadcast %45 : vector<1x6xf32> to vector<8x6xf32>
    %54 = arith.mulf %52, %53 : vector<8x6xf32>
    %cst_16 = arith.constant dense<0.000000e+00> : vector<8x6xf32>
    %55 = tpu.matmul %18, %26, %cst_16 {dimension_numbers = #tpu.dot_dimension_numbers<[1], [1], [0], [0], [0, 0, 1, 0], [], []>} : vector<8x128xf32>, vector<6x128xf32>, vector<8x6xf32> -> vector<8x6xf32>
    %56 = vector.broadcast %41 : vector<8x1xf32> to vector<8x6xf32>
    %57 = arith.mulf %55, %56 : vector<8x6xf32>
    %58 = vector.broadcast %49 : vector<1x6xf32> to vector<8x6xf32>
    %59 = arith.mulf %57, %58 : vector<8x6xf32>
    %60 = vector.extract_strided_slice %0 {offsets = [8, 0], sizes = [8, 128], strides = [1, 1]} : vector<34x128xf32> to vector<8x128xf32>
    %61 = vector.shape_cast %18 : vector<8x128xf32> to vector<8x1x128xf32>
    %62 = vector.shape_cast %60 : vector<8x128xf32> to vector<1x8x128xf32>
    %63 = vector.broadcast %61 : vector<8x1x128xf32> to vector<8x8x128xf32>
    %64 = vector.broadcast %62 : vector<1x8x128xf32> to vector<8x8x128xf32>
    %65 = arith.mulf %63, %64 : vector<8x8x128xf32>
    %66 = vector.shape_cast %65 : vector<8x8x128xf32> to vector<64x128xf32>
    %cst_17 = arith.constant dense<0.000000e+00> : vector<64x6xf32>
    %67 = tpu.matmul %66, %4, %cst_17 {dimension_numbers = #tpu.dot_dimension_numbers<[1], [1], [0], [0], [0, 0, 1, 0], [], []>} : vector<64x128xf32>, vector<6x128xf32>, vector<64x6xf32> -> vector<64x6xf32>
    %68 = vector.shape_cast %67 : vector<64x6xf32> to vector<8x8x6xf32>
    %69 = vector.extract_strided_slice %33 {offsets = [8, 0], sizes = [8, 6], strides = [1, 1]} : vector<34x6xf32> to vector<8x6xf32>
    %cst_18 = arith.constant 9.99999996E-13 : f32
    %70 = vector.broadcast %cst_18 : f32 to vector<8x6xf32>
    %71 = arith.maximumf %69, %70 : vector<8x6xf32>
    %72 = math.rsqrt %71 : vector<8x6xf32>
    %73 = vector.extract_strided_slice %31 {offsets = [0, 8], sizes = [8, 8], strides = [1, 1]} : vector<8x34xf32> to vector<8x8xf32>
    %cst_19 = arith.constant 9.99999996E-13 : f32
    %74 = vector.broadcast %cst_19 : f32 to vector<8x8xf32>
    %75 = arith.maximumf %73, %74 : vector<8x8xf32>
    %76 = math.rsqrt %75 : vector<8x8xf32>
    %77 = vector.shape_cast %72 : vector<8x6xf32> to vector<1x8x6xf32>
    %78 = vector.broadcast %77 : vector<1x8x6xf32> to vector<8x8x6xf32>
    %79 = arith.mulf %68, %78 : vector<8x8x6xf32>
    %cst_20 = arith.constant dense<0xFF800000> : vector<8x8xf32>
    %80 = vector.multi_reduction <maximumf>, %79, %cst_20 [2] : vector<8x8x6xf32> to vector<8x8xf32>
    %81 = arith.mulf %80, %76 : vector<8x8xf32>
    %cst_21 = arith.constant dense<0.000000e+00> : vector<8xf32>
    %82 = vector.multi_reduction <add>, %54, %cst_21 [1] : vector<8x6xf32> to vector<8xf32>
    %83 = vector.shape_cast %82 : vector<8xf32> to vector<8x1xf32>
    %84 = math.absf %83 : vector<8x1xf32>
    %cst_22 = arith.constant 9.99999993E-9 : f32
    %85 = vector.broadcast %cst_22 : f32 to vector<8x1xf32>
    %86 = arith.cmpf olt, %84, %85 : vector<8x1xf32>
    %cst_23 = arith.constant 0.000000e+00 : f32
    %87 = vector.broadcast %cst_23 : f32 to vector<8x1xf32>
    %88 = arith.cmpf oge, %83, %87 : vector<8x1xf32>
    %cst_24 = arith.constant 9.99999993E-9 : f32
    %cst_25 = arith.constant -9.99999993E-9 : f32
    %89 = vector.broadcast %cst_24 : f32 to vector<8x1xf32>
    %90 = vector.broadcast %cst_25 : f32 to vector<8x1xf32>
    %91 = arith.select %88, %89, %90 : vector<8x1xi1>, vector<8x1xf32>
    %92 = arith.select %86, %91, %83 : vector<8x1xi1>, vector<8x1xf32>
    %cst_26 = arith.constant 1.000000e+00 : f32
    %93 = vector.broadcast %cst_26 : f32 to vector<8x1xf32>
    %94 = arith.divf %93, %92 : vector<8x1xf32>
    %95 = vector.broadcast %94 : vector<8x1xf32> to vector<8x6xf32>
    %96 = arith.mulf %54, %95 : vector<8x6xf32>
    %cst_27 = arith.constant dense<0.000000e+00> : vector<8xf32>
    %97 = vector.multi_reduction <add>, %59, %cst_27 [1] : vector<8x6xf32> to vector<8xf32>
    %98 = vector.shape_cast %97 : vector<8xf32> to vector<8x1xf32>
    %99 = math.absf %98 : vector<8x1xf32>
    %cst_28 = arith.constant 9.99999993E-9 : f32
    %100 = vector.broadcast %cst_28 : f32 to vector<8x1xf32>
    %101 = arith.cmpf olt, %99, %100 : vector<8x1xf32>
    %cst_29 = arith.constant 0.000000e+00 : f32
    %102 = vector.broadcast %cst_29 : f32 to vector<8x1xf32>
    %103 = arith.cmpf oge, %98, %102 : vector<8x1xf32>
    %cst_30 = arith.constant 9.99999993E-9 : f32
    %cst_31 = arith.constant -9.99999993E-9 : f32
    %104 = vector.broadcast %cst_30 : f32 to vector<8x1xf32>
    %105 = vector.broadcast %cst_31 : f32 to vector<8x1xf32>
    %106 = arith.select %103, %104, %105 : vector<8x1xi1>, vector<8x1xf32>
    %107 = arith.select %101, %106, %98 : vector<8x1xi1>, vector<8x1xf32>
    %cst_32 = arith.constant 1.000000e+00 : f32
    %108 = vector.broadcast %cst_32 : f32 to vector<8x1xf32>
    %109 = arith.divf %108, %107 : vector<8x1xf32>
    %110 = vector.broadcast %109 : vector<8x1xf32> to vector<8x6xf32>
    %111 = arith.mulf %59, %110 : vector<8x6xf32>
    %112 = tpu.iota {dimensions = array<i32: 1>} : vector<8x6xi32>
    %cst_33 = arith.constant dense<0xFF800000> : vector<8xf32>
    %113 = vector.multi_reduction <maximumf>, %54, %cst_33 [1] : vector<8x6xf32> to vector<8xf32>
    %114 = vector.shape_cast %113 : vector<8xf32> to vector<8x1xf32>
    %115 = vector.broadcast %114 : vector<8x1xf32> to vector<8x6xf32>
    %116 = arith.cmpf oge, %54, %115 : vector<8x6xf32>
    %c6_i32 = arith.constant 6 : i32
    %117 = vector.broadcast %c6_i32 : i32 to vector<8x6xi32>
    %118 = arith.select %116, %112, %117 : vector<8x6xi1>, vector<8x6xi32>
    %cst_34 = arith.constant dense<2147483647> : vector<8xi32>
    %119 = vector.multi_reduction <minsi>, %118, %cst_34 [1] : vector<8x6xi32> to vector<8xi32>
    %120 = vector.shape_cast %119 : vector<8xi32> to vector<8x1xi32>
    %121 = vector.broadcast %120 : vector<8x1xi32> to vector<8x6xi32>
    %122 = arith.cmpi eq, %112, %121 : vector<8x6xi32>
    %123 = arith.extui %122 : vector<8x6xi1> to vector<8x6xi32>
    %124 = arith.sitofp %123 : vector<8x6xi32> to vector<8x6xf32>
    %125 = tpu.concatenate %96, %124 in 0 : vector<8x6xf32>, vector<8x6xf32> -> vector<16x6xf32>
    %cst_35 = arith.constant dense<0xFF800000> : vector<8xf32>
    %126 = vector.multi_reduction <maximumf>, %59, %cst_35 [1] : vector<8x6xf32> to vector<8xf32>
    %127 = vector.shape_cast %126 : vector<8xf32> to vector<8x1xf32>
    %128 = vector.broadcast %127 : vector<8x1xf32> to vector<8x6xf32>
    %129 = arith.cmpf oge, %59, %128 : vector<8x6xf32>
    %c6_i32_36 = arith.constant 6 : i32
    %130 = vector.broadcast %c6_i32_36 : i32 to vector<8x6xi32>
    %131 = arith.select %129, %112, %130 : vector<8x6xi1>, vector<8x6xi32>
    %cst_37 = arith.constant dense<2147483647> : vector<8xi32>
    %132 = vector.multi_reduction <minsi>, %131, %cst_37 [1] : vector<8x6xi32> to vector<8xi32>
    %133 = vector.shape_cast %132 : vector<8xi32> to vector<8x1xi32>
    %134 = vector.broadcast %133 : vector<8x1xi32> to vector<8x6xi32>
    %135 = arith.cmpi eq, %112, %134 : vector<8x6xi32>
    %136 = arith.extui %135 : vector<8x6xi1> to vector<8x6xi32>
    %137 = arith.sitofp %136 : vector<8x6xi32> to vector<8x6xf32>
    %138 = tpu.concatenate %111, %137 in 0 : vector<8x6xf32>, vector<8x6xf32> -> vector<16x6xf32>
    %cst_38 = arith.constant dense<0.000000e+00> : vector<16x128xf32>
    %139 = tpu.matmul %125, %22, %cst_38 {dimension_numbers = #tpu.dot_dimension_numbers<[1], [0], [0], [1], [0, 0, 1, 1], [], []>} : vector<16x6xf32>, vector<6x128xf32>, vector<16x128xf32> -> vector<16x128xf32>
    %cst_39 = arith.constant dense<0.000000e+00> : vector<16x128xf32>
    %140 = tpu.matmul %138, %26, %cst_39 {dimension_numbers = #tpu.dot_dimension_numbers<[1], [0], [0], [1], [0, 0, 1, 1], [], []>} : vector<16x6xf32>, vector<6x128xf32>, vector<16x128xf32> -> vector<16x128xf32>
    %141 = arith.addf %139, %140 : vector<16x128xf32>
    %142 = vector.extract_strided_slice %141 {offsets = [0, 0], sizes = [8, 128], strides = [1, 1]} : vector<16x128xf32> to vector<8x128xf32>
    %143 = vector.extract_strided_slice %141 {offsets = [8, 0], sizes = [8, 128], strides = [1, 1]} : vector<16x128xf32> to vector<8x128xf32>
    %144 = vector.extract_strided_slice %0 {offsets = [0, 0], sizes = [8, 128], strides = [1, 1]} : vector<34x128xf32> to vector<8x128xf32>
    %145 = vector.extract_strided_slice %0 {offsets = [16, 0], sizes = [8, 128], strides = [1, 1]} : vector<34x128xf32> to vector<8x128xf32>
    %146 = vector.extract_strided_slice %0 {offsets = [24, 0], sizes = [8, 128], strides = [1, 1]} : vector<34x128xf32> to vector<8x128xf32>
    %147 = arith.mulf %29, %29 : vector<1x128xf32>
    %cst_40 = arith.constant dense<0.000000e+00> : vector<1x8xf32>
    %148 = tpu.matmul %147, %144, %cst_40 {dimension_numbers = #tpu.dot_dimension_numbers<[1], [1], [0], [0], [0, 0, 1, 0], [], []>} : vector<1x128xf32>, vector<8x128xf32>, vector<1x8xf32> -> vector<1x8xf32>
    %149 = vector.broadcast %29 : vector<1x128xf32> to vector<8x128xf32>
    %150 = arith.mulf %18, %149 : vector<8x128xf32>
    %cst_41 = arith.constant dense<0.000000e+00> : vector<8x8xf32>
    %151 = tpu.matmul %150, %144, %cst_41 {dimension_numbers = #tpu.dot_dimension_numbers<[1], [1], [0], [0], [0, 0, 1, 0], [], []>} : vector<8x128xf32>, vector<8x128xf32>, vector<8x8xf32> -> vector<8x8xf32>
    %152 = vector.extract_strided_slice %31 {offsets = [0, 0], sizes = [8, 8], strides = [1, 1]} : vector<8x34xf32> to vector<8x8xf32>
    %cst_42 = arith.constant 9.99999996E-13 : f32
    %153 = vector.broadcast %cst_42 : f32 to vector<8x8xf32>
    %154 = arith.maximumf %152, %153 : vector<8x8xf32>
    %155 = math.rsqrt %154 : vector<8x8xf32>
    %156 = arith.mulf %151, %155 : vector<8x8xf32>
    %cst_43 = arith.constant 9.99999996E-13 : f32
    %157 = vector.broadcast %cst_43 : f32 to vector<1x8xf32>
    %158 = arith.maximumf %148, %157 : vector<1x8xf32>
    %159 = math.rsqrt %158 : vector<1x8xf32>
    %160 = vector.broadcast %159 : vector<1x8xf32> to vector<8x8xf32>
    %161 = arith.mulf %156, %160 : vector<8x8xf32>
    %162 = arith.mulf %18, %142 : vector<8x128xf32>
    %cst_44 = arith.constant dense<0.000000e+00> : vector<8x8xf32>
    %163 = tpu.matmul %162, %145, %cst_44 {dimension_numbers = #tpu.dot_dimension_numbers<[1], [1], [0], [0], [0, 0, 1, 0], [], []>} : vector<8x128xf32>, vector<8x128xf32>, vector<8x8xf32> -> vector<8x8xf32>
    %164 = vector.extract_strided_slice %31 {offsets = [0, 16], sizes = [8, 8], strides = [1, 1]} : vector<8x34xf32> to vector<8x8xf32>
    %165 = arith.mulf %142, %142 : vector<8x128xf32>
    %cst_45 = arith.constant dense<0.000000e+00> : vector<8x8xf32>
    %166 = tpu.matmul %165, %145, %cst_45 {dimension_numbers = #tpu.dot_dimension_numbers<[1], [1], [0], [0], [0, 0, 1, 0], [], []>} : vector<8x128xf32>, vector<8x128xf32>, vector<8x8xf32> -> vector<8x8xf32>
    %167 = arith.mulf %164, %166 : vector<8x8xf32>
    %cst_46 = arith.constant 1.000000e-24 : f32
    %168 = vector.broadcast %cst_46 : f32 to vector<8x8xf32>
    %169 = arith.maximumf %167, %168 : vector<8x8xf32>
    %170 = math.rsqrt %169 : vector<8x8xf32>
    %171 = arith.mulf %163, %170 : vector<8x8xf32>
    %172 = arith.mulf %18, %143 : vector<8x128xf32>
    %cst_47 = arith.constant dense<0.000000e+00> : vector<8x8xf32>
    %173 = tpu.matmul %172, %146, %cst_47 {dimension_numbers = #tpu.dot_dimension_numbers<[1], [1], [0], [0], [0, 0, 1, 0], [], []>} : vector<8x128xf32>, vector<8x128xf32>, vector<8x8xf32> -> vector<8x8xf32>
    %174 = vector.extract_strided_slice %31 {offsets = [0, 24], sizes = [8, 8], strides = [1, 1]} : vector<8x34xf32> to vector<8x8xf32>
    %175 = arith.mulf %143, %143 : vector<8x128xf32>
    %cst_48 = arith.constant dense<0.000000e+00> : vector<8x8xf32>
    %176 = tpu.matmul %175, %146, %cst_48 {dimension_numbers = #tpu.dot_dimension_numbers<[1], [1], [0], [0], [0, 0, 1, 0], [], []>} : vector<8x128xf32>, vector<8x128xf32>, vector<8x8xf32> -> vector<8x8xf32>
    %177 = arith.mulf %174, %176 : vector<8x8xf32>
    %cst_49 = arith.constant 1.000000e-24 : f32
    %178 = vector.broadcast %cst_49 : f32 to vector<8x8xf32>
    %179 = arith.maximumf %177, %178 : vector<8x8xf32>
    %180 = math.rsqrt %179 : vector<8x8xf32>
    %181 = arith.mulf %173, %180 : vector<8x8xf32>
    %182 = tpu.concatenate %161, %81, %171, %181 in 1 : vector<8x8xf32>, vector<8x8xf32>, vector<8x8xf32>, vector<8x8xf32> -> vector<8x32xf32>
    %cst_50 = arith.constant 0.000000e+00 : f32
    %183 = vector.broadcast %cst_50 : f32 to vector<8x96xf32>
    %184 = tpu.concatenate %182, %183 in 1 : vector<8x32xf32>, vector<8x96xf32> -> vector<8x128xf32>
    %c0_51 = arith.constant 0 : index
    %c0_52 = arith.constant 0 : index
    %c0_53 = arith.constant 0 : index
    %185 = vector.load %arg4[%c0_51, %c0_52, %c0_53] : memref<1x8x128xf32, #tpu.memory_space<vmem>>, vector<1x8x128xf32>
    %186 = vector.shape_cast %185 : vector<1x8x128xf32> to vector<8x128xf32>
    %187 = vector.shape_cast %184 : vector<8x128xf32> to vector<1x8x128xf32>
    tpu.vector_store %arg4[%c0_51, %c0_52, %c0_53], %187 {strides = array<i32>} : memref<1x8x128xf32, #tpu.memory_space<vmem>>, vector<1x8x128xf32>,
    %188 = tpu.iota {dimensions = array<i32: 1>} : vector<1x128xi32>
    %c16_i32_54 = arith.constant 16 : i32
    %189 = vector.broadcast %c16_i32_54 : i32 to vector<1x128xi32>
    %190 = arith.cmpi slt, %188, %189 : vector<1x128xi32>
    %191 = tpu.iota {dimensions = array<i32: 0>} : vector<6x6xi32>
    %192 = tpu.iota {dimensions = array<i32: 1>} : vector<6x6xi32>
    %c5_i32 = arith.constant 5 : i32
    %193 = vector.broadcast %c5_i32 : i32 to vector<6x6xi32>
    %194 = arith.subi %193, %191 : vector<6x6xi32>
    %195 = arith.cmpi eq, %192, %194 : vector<6x6xi32>
    %196 = arith.extui %195 : vector<6x6xi1> to vector<6x6xi32>
    %197 = arith.sitofp %196 : vector<6x6xi32> to vector<6x6xf32>
    %cst_55 = arith.constant dense<0.000000e+00> : vector<6x128xf32>
    %198 = tpu.matmul %197, %4, %cst_55 {dimension_numbers = #tpu.dot_dimension_numbers<[1], [0], [0], [1], [0, 0, 1, 1], [], []>} : vector<6x6xf32>, vector<6x128xf32>, vector<6x128xf32> -> vector<6x128xf32>
    %199 = vector.shape_cast %190 : vector<1x128xi1> to vector<1x128xi1>
    %200 = vector.broadcast %199 : vector<1x128xi1> to vector<6x128xi1>
    %201 = arith.select %200, %4, %198 : vector<6x128xi1>, vector<6x128xf32>
    %cst_56 = arith.constant 0.000000e+00 : f32
    %202 = vector.shape_cast %190 : vector<1x128xi1> to vector<1x128xi1>
    %203 = vector.broadcast %202 : vector<1x128xi1> to vector<8x128xi1>
    %204 = vector.broadcast %cst_56 : f32 to vector<8x128xf32>
    %205 = arith.select %203, %2, %204 : vector<8x128xi1>, vector<8x128xf32>
    %cst_57 = arith.constant 0.000000e+00 : f32
    %206 = vector.shape_cast %190 : vector<1x128xi1> to vector<1x128xi1>
    %207 = vector.broadcast %206 : vector<1x128xi1> to vector<8x128xi1>
    %208 = vector.broadcast %cst_57 : f32 to vector<8x128xf32>
    %209 = arith.select %207, %208, %2 : vector<8x128xi1>, vector<8x128xf32>
    %210 = vector.extract_strided_slice %2 {offsets = [7, 0], sizes = [1, 128], strides = [1, 1]} : vector<8x128xf32> to vector<1x128xf32>
    %211 = vector.extract_strided_slice %2 {offsets = [0, 0], sizes = [1, 128], strides = [1, 1]} : vector<8x128xf32> to vector<1x128xf32>
    %212 = arith.select %190, %210, %211 : vector<1x128xi1>, vector<1x128xf32>
    %213 = arith.mulf %201, %201 : vector<6x128xf32>
    %cst_58 = arith.constant dense<0.000000e+00> : vector<6x34xf32>
    %214 = tpu.matmul %213, %0, %cst_58 {dimension_numbers = #tpu.dot_dimension_numbers<[1], [1], [0], [0], [0, 0, 1, 0], [], []>} : vector<6x128xf32>, vector<34x128xf32>, vector<6x34xf32> -> vector<6x34xf32>
    %215 = arith.mulf %2, %2 : vector<8x128xf32>
    %cst_59 = arith.constant dense<0.000000e+00> : vector<34x8xf32>
    %216 = tpu.matmul %0, %215, %cst_59 {dimension_numbers = #tpu.dot_dimension_numbers<[1], [1], [0], [0], [0, 0, 1, 0], [], []>} : vector<34x128xf32>, vector<8x128xf32>, vector<34x8xf32> -> vector<34x8xf32>
    %217 = vector.extract_strided_slice %214 {offsets = [0, 32], sizes = [6, 1], strides = [1, 1]} : vector<6x34xf32> to vector<6x1xf32>
    %cst_60 = arith.constant 9.99999996E-13 : f32
    %218 = vector.broadcast %cst_60 : f32 to vector<6x1xf32>
    %219 = arith.maximumf %217, %218 : vector<6x1xf32>
    %220 = math.rsqrt %219 : vector<6x1xf32>
    %221 = vector.extract_strided_slice %214 {offsets = [0, 33], sizes = [6, 1], strides = [1, 1]} : vector<6x34xf32> to vector<6x1xf32>
    %cst_61 = arith.constant 9.99999996E-13 : f32
    %222 = vector.broadcast %cst_61 : f32 to vector<6x1xf32>
    %223 = arith.maximumf %221, %222 : vector<6x1xf32>
    %224 = math.rsqrt %223 : vector<6x1xf32>
    %225 = vector.extract_strided_slice %216 {offsets = [32, 0], sizes = [1, 8], strides = [1, 1]} : vector<34x8xf32> to vector<1x8xf32>
    %cst_62 = arith.constant 9.99999996E-13 : f32
    %226 = vector.broadcast %cst_62 : f32 to vector<1x8xf32>
    %227 = arith.maximumf %225, %226 : vector<1x8xf32>
    %228 = math.rsqrt %227 : vector<1x8xf32>
    %229 = vector.extract_strided_slice %216 {offsets = [33, 0], sizes = [1, 8], strides = [1, 1]} : vector<34x8xf32> to vector<1x8xf32>
    %cst_63 = arith.constant 9.99999996E-13 : f32
    %230 = vector.broadcast %cst_63 : f32 to vector<1x8xf32>
    %231 = arith.maximumf %229, %230 : vector<1x8xf32>
    %232 = math.rsqrt %231 : vector<1x8xf32>
    %cst_64 = arith.constant dense<0.000000e+00> : vector<6x8xf32>
    %233 = tpu.matmul %201, %205, %cst_64 {dimension_numbers = #tpu.dot_dimension_numbers<[1], [1], [0], [0], [0, 0, 1, 0], [], []>} : vector<6x128xf32>, vector<8x128xf32>, vector<6x8xf32> -> vector<6x8xf32>
    %234 = vector.broadcast %220 : vector<6x1xf32> to vector<6x8xf32>
    %235 = arith.mulf %233, %234 : vector<6x8xf32>
    %236 = vector.broadcast %228 : vector<1x8xf32> to vector<6x8xf32>
    %237 = arith.mulf %235, %236 : vector<6x8xf32>
    %cst_65 = arith.constant dense<0.000000e+00> : vector<6x8xf32>
    %238 = tpu.matmul %201, %209, %cst_65 {dimension_numbers = #tpu.dot_dimension_numbers<[1], [1], [0], [0], [0, 0, 1, 0], [], []>} : vector<6x128xf32>, vector<8x128xf32>, vector<6x8xf32> -> vector<6x8xf32>
    %239 = vector.broadcast %224 : vector<6x1xf32> to vector<6x8xf32>
    %240 = arith.mulf %238, %239 : vector<6x8xf32>
    %241 = vector.broadcast %232 : vector<1x8xf32> to vector<6x8xf32>
    %242 = arith.mulf %240, %241 : vector<6x8xf32>
    %243 = vector.extract_strided_slice %0 {offsets = [8, 0], sizes = [8, 128], strides = [1, 1]} : vector<34x128xf32> to vector<8x128xf32>
    %244 = vector.shape_cast %201 : vector<6x128xf32> to vector<6x1x128xf32>
    %245 = vector.shape_cast %243 : vector<8x128xf32> to vector<1x8x128xf32>
    %246 = vector.broadcast %244 : vector<6x1x128xf32> to vector<6x8x128xf32>
    %247 = vector.broadcast %245 : vector<1x8x128xf32> to vector<6x8x128xf32>
    %248 = arith.mulf %246, %247 : vector<6x8x128xf32>
    %249 = vector.shape_cast %248 : vector<6x8x128xf32> to vector<48x128xf32>
    %cst_66 = arith.constant dense<0.000000e+00> : vector<48x8xf32>
    %250 = tpu.matmul %249, %2, %cst_66 {dimension_numbers = #tpu.dot_dimension_numbers<[1], [1], [0], [0], [0, 0, 1, 0], [], []>} : vector<48x128xf32>, vector<8x128xf32>, vector<48x8xf32> -> vector<48x8xf32>
    %251 = vector.shape_cast %250 : vector<48x8xf32> to vector<6x8x8xf32>
    %252 = vector.extract_strided_slice %216 {offsets = [8, 0], sizes = [8, 8], strides = [1, 1]} : vector<34x8xf32> to vector<8x8xf32>
    %cst_67 = arith.constant 9.99999996E-13 : f32
    %253 = vector.broadcast %cst_67 : f32 to vector<8x8xf32>
    %254 = arith.maximumf %252, %253 : vector<8x8xf32>
    %255 = math.rsqrt %254 : vector<8x8xf32>
    %256 = vector.extract_strided_slice %214 {offsets = [0, 8], sizes = [6, 8], strides = [1, 1]} : vector<6x34xf32> to vector<6x8xf32>
    %cst_68 = arith.constant 9.99999996E-13 : f32
    %257 = vector.broadcast %cst_68 : f32 to vector<6x8xf32>
    %258 = arith.maximumf %256, %257 : vector<6x8xf32>
    %259 = math.rsqrt %258 : vector<6x8xf32>
    %260 = vector.shape_cast %255 : vector<8x8xf32> to vector<1x8x8xf32>
    %261 = vector.broadcast %260 : vector<1x8x8xf32> to vector<6x8x8xf32>
    %262 = arith.mulf %251, %261 : vector<6x8x8xf32>
    %cst_69 = arith.constant dense<0xFF800000> : vector<6x8xf32>
    %263 = vector.multi_reduction <maximumf>, %262, %cst_69 [2] : vector<6x8x8xf32> to vector<6x8xf32>
    %264 = arith.mulf %263, %259 : vector<6x8xf32>
    %cst_70 = arith.constant dense<0.000000e+00> : vector<6xf32>
    %265 = vector.multi_reduction <add>, %237, %cst_70 [1] : vector<6x8xf32> to vector<6xf32>
    %266 = vector.shape_cast %265 : vector<6xf32> to vector<6x1xf32>
    %267 = math.absf %266 : vector<6x1xf32>
    %cst_71 = arith.constant 9.99999993E-9 : f32
    %268 = vector.broadcast %cst_71 : f32 to vector<6x1xf32>
    %269 = arith.cmpf olt, %267, %268 : vector<6x1xf32>
    %cst_72 = arith.constant 0.000000e+00 : f32
    %270 = vector.broadcast %cst_72 : f32 to vector<6x1xf32>
    %271 = arith.cmpf oge, %266, %270 : vector<6x1xf32>
    %cst_73 = arith.constant 9.99999993E-9 : f32
    %cst_74 = arith.constant -9.99999993E-9 : f32
    %272 = vector.broadcast %cst_73 : f32 to vector<6x1xf32>
    %273 = vector.broadcast %cst_74 : f32 to vector<6x1xf32>
    %274 = arith.select %271, %272, %273 : vector<6x1xi1>, vector<6x1xf32>
    %275 = arith.select %269, %274, %266 : vector<6x1xi1>, vector<6x1xf32>
    %cst_75 = arith.constant 1.000000e+00 : f32
    %276 = vector.broadcast %cst_75 : f32 to vector<6x1xf32>
    %277 = arith.divf %276, %275 : vector<6x1xf32>
    %278 = vector.broadcast %277 : vector<6x1xf32> to vector<6x8xf32>
    %279 = arith.mulf %237, %278 : vector<6x8xf32>
    %cst_76 = arith.constant dense<0.000000e+00> : vector<6xf32>
    %280 = vector.multi_reduction <add>, %242, %cst_76 [1] : vector<6x8xf32> to vector<6xf32>
    %281 = vector.shape_cast %280 : vector<6xf32> to vector<6x1xf32>
    %282 = math.absf %281 : vector<6x1xf32>
    %cst_77 = arith.constant 9.99999993E-9 : f32
    %283 = vector.broadcast %cst_77 : f32 to vector<6x1xf32>
    %284 = arith.cmpf olt, %282, %283 : vector<6x1xf32>
    %cst_78 = arith.constant 0.000000e+00 : f32
    %285 = vector.broadcast %cst_78 : f32 to vector<6x1xf32>
    %286 = arith.cmpf oge, %281, %285 : vector<6x1xf32>
    %cst_79 = arith.constant 9.99999993E-9 : f32
    %cst_80 = arith.constant -9.99999993E-9 : f32
    %287 = vector.broadcast %cst_79 : f32 to vector<6x1xf32>
    %288 = vector.broadcast %cst_80 : f32 to vector<6x1xf32>
    %289 = arith.select %286, %287, %288 : vector<6x1xi1>, vector<6x1xf32>
    %290 = arith.select %284, %289, %281 : vector<6x1xi1>, vector<6x1xf32>
    %cst_81 = arith.constant 1.000000e+00 : f32
    %291 = vector.broadcast %cst_81 : f32 to vector<6x1xf32>
    %292 = arith.divf %291, %290 : vector<6x1xf32>
    %293 = vector.broadcast %292 : vector<6x1xf32> to vector<6x8xf32>
    %294 = arith.mulf %242, %293 : vector<6x8xf32>
    %295 = tpu.iota {dimensions = array<i32: 1>} : vector<6x8xi32>
    %cst_82 = arith.constant dense<0xFF800000> : vector<6xf32>
    %296 = vector.multi_reduction <maximumf>, %237, %cst_82 [1] : vector<6x8xf32> to vector<6xf32>
    %297 = vector.shape_cast %296 : vector<6xf32> to vector<6x1xf32>
    %298 = vector.broadcast %297 : vector<6x1xf32> to vector<6x8xf32>
    %299 = arith.cmpf oge, %237, %298 : vector<6x8xf32>
    %c8_i32 = arith.constant 8 : i32
    %300 = vector.broadcast %c8_i32 : i32 to vector<6x8xi32>
    %301 = arith.select %299, %295, %300 : vector<6x8xi1>, vector<6x8xi32>
    %cst_83 = arith.constant dense<2147483647> : vector<6xi32>
    %302 = vector.multi_reduction <minsi>, %301, %cst_83 [1] : vector<6x8xi32> to vector<6xi32>
    %303 = vector.shape_cast %302 : vector<6xi32> to vector<6x1xi32>
    %304 = vector.broadcast %303 : vector<6x1xi32> to vector<6x8xi32>
    %305 = arith.cmpi eq, %295, %304 : vector<6x8xi32>
    %306 = arith.extui %305 : vector<6x8xi1> to vector<6x8xi32>
    %307 = arith.sitofp %306 : vector<6x8xi32> to vector<6x8xf32>
    %308 = tpu.concatenate %279, %307 in 0 : vector<6x8xf32>, vector<6x8xf32> -> vector<12x8xf32>
    %cst_84 = arith.constant dense<0xFF800000> : vector<6xf32>
    %309 = vector.multi_reduction <maximumf>, %242, %cst_84 [1] : vector<6x8xf32> to vector<6xf32>
    %310 = vector.shape_cast %309 : vector<6xf32> to vector<6x1xf32>
    %311 = vector.broadcast %310 : vector<6x1xf32> to vector<6x8xf32>
    %312 = arith.cmpf oge, %242, %311 : vector<6x8xf32>
    %c8_i32_85 = arith.constant 8 : i32
    %313 = vector.broadcast %c8_i32_85 : i32 to vector<6x8xi32>
    %314 = arith.select %312, %295, %313 : vector<6x8xi1>, vector<6x8xi32>
    %cst_86 = arith.constant dense<2147483647> : vector<6xi32>
    %315 = vector.multi_reduction <minsi>, %314, %cst_86 [1] : vector<6x8xi32> to vector<6xi32>
    %316 = vector.shape_cast %315 : vector<6xi32> to vector<6x1xi32>
    %317 = vector.broadcast %316 : vector<6x1xi32> to vector<6x8xi32>
    %318 = arith.cmpi eq, %295, %317 : vector<6x8xi32>
    %319 = arith.extui %318 : vector<6x8xi1> to vector<6x8xi32>
    %320 = arith.sitofp %319 : vector<6x8xi32> to vector<6x8xf32>
    %321 = tpu.concatenate %294, %320 in 0 : vector<6x8xf32>, vector<6x8xf32> -> vector<12x8xf32>
    %cst_87 = arith.constant dense<0.000000e+00> : vector<12x128xf32>
    %322 = tpu.matmul %308, %205, %cst_87 {dimension_numbers = #tpu.dot_dimension_numbers<[1], [0], [0], [1], [0, 0, 1, 1], [], []>} : vector<12x8xf32>, vector<8x128xf32>, vector<12x128xf32> -> vector<12x128xf32>
    %cst_88 = arith.constant dense<0.000000e+00> : vector<12x128xf32>
    %323 = tpu.matmul %321, %209, %cst_88 {dimension_numbers = #tpu.dot_dimension_numbers<[1], [0], [0], [1], [0, 0, 1, 1], [], []>} : vector<12x8xf32>, vector<8x128xf32>, vector<12x128xf32> -> vector<12x128xf32>
    %324 = arith.addf %322, %323 : vector<12x128xf32>
    %325 = vector.extract_strided_slice %324 {offsets = [0, 0], sizes = [6, 128], strides = [1, 1]} : vector<12x128xf32> to vector<6x128xf32>
    %326 = vector.extract_strided_slice %324 {offsets = [6, 0], sizes = [6, 128], strides = [1, 1]} : vector<12x128xf32> to vector<6x128xf32>
    %327 = vector.extract_strided_slice %0 {offsets = [0, 0], sizes = [8, 128], strides = [1, 1]} : vector<34x128xf32> to vector<8x128xf32>
    %328 = vector.extract_strided_slice %0 {offsets = [16, 0], sizes = [8, 128], strides = [1, 1]} : vector<34x128xf32> to vector<8x128xf32>
    %329 = vector.extract_strided_slice %0 {offsets = [24, 0], sizes = [8, 128], strides = [1, 1]} : vector<34x128xf32> to vector<8x128xf32>
    %330 = arith.mulf %212, %212 : vector<1x128xf32>
    %cst_89 = arith.constant dense<0.000000e+00> : vector<1x8xf32>
    %331 = tpu.matmul %330, %327, %cst_89 {dimension_numbers = #tpu.dot_dimension_numbers<[1], [1], [0], [0], [0, 0, 1, 0], [], []>} : vector<1x128xf32>, vector<8x128xf32>, vector<1x8xf32> -> vector<1x8xf32>
    %332 = vector.broadcast %212 : vector<1x128xf32> to vector<6x128xf32>
    %333 = arith.mulf %201, %332 : vector<6x128xf32>
    %cst_90 = arith.constant dense<0.000000e+00> : vector<6x8xf32>
    %334 = tpu.matmul %333, %327, %cst_90 {dimension_numbers = #tpu.dot_dimension_numbers<[1], [1], [0], [0], [0, 0, 1, 0], [], []>} : vector<6x128xf32>, vector<8x128xf32>, vector<6x8xf32> -> vector<6x8xf32>
    %335 = vector.extract_strided_slice %214 {offsets = [0, 0], sizes = [6, 8], strides = [1, 1]} : vector<6x34xf32> to vector<6x8xf32>
    %cst_91 = arith.constant 9.99999996E-13 : f32
    %336 = vector.broadcast %cst_91 : f32 to vector<6x8xf32>
    %337 = arith.maximumf %335, %336 : vector<6x8xf32>
    %338 = math.rsqrt %337 : vector<6x8xf32>
    %339 = arith.mulf %334, %338 : vector<6x8xf32>
    %cst_92 = arith.constant 9.99999996E-13 : f32
    %340 = vector.broadcast %cst_92 : f32 to vector<1x8xf32>
    %341 = arith.maximumf %331, %340 : vector<1x8xf32>
    %342 = math.rsqrt %341 : vector<1x8xf32>
    %343 = vector.broadcast %342 : vector<1x8xf32> to vector<6x8xf32>
    %344 = arith.mulf %339, %343 : vector<6x8xf32>
    %345 = arith.mulf %201, %325 : vector<6x128xf32>
    %cst_93 = arith.constant dense<0.000000e+00> : vector<6x8xf32>
    %346 = tpu.matmul %345, %328, %cst_93 {dimension_numbers = #tpu.dot_dimension_numbers<[1], [1], [0], [0], [0, 0, 1, 0], [], []>} : vector<6x128xf32>, vector<8x128xf32>, vector<6x8xf32> -> vector<6x8xf32>
    %347 = vector.extract_strided_slice %214 {offsets = [0, 16], sizes = [6, 8], strides = [1, 1]} : vector<6x34xf32> to vector<6x8xf32>
    %348 = arith.mulf %325, %325 : vector<6x128xf32>
    %cst_94 = arith.constant dense<0.000000e+00> : vector<6x8xf32>
    %349 = tpu.matmul %348, %328, %cst_94 {dimension_numbers = #tpu.dot_dimension_numbers<[1], [1], [0], [0], [0, 0, 1, 0], [], []>} : vector<6x128xf32>, vector<8x128xf32>, vector<6x8xf32> -> vector<6x8xf32>
    %350 = arith.mulf %347, %349 : vector<6x8xf32>
    %cst_95 = arith.constant 1.000000e-24 : f32
    %351 = vector.broadcast %cst_95 : f32 to vector<6x8xf32>
    %352 = arith.maximumf %350, %351 : vector<6x8xf32>
    %353 = math.rsqrt %352 : vector<6x8xf32>
    %354 = arith.mulf %346, %353 : vector<6x8xf32>
    %355 = arith.mulf %201, %326 : vector<6x128xf32>
    %cst_96 = arith.constant dense<0.000000e+00> : vector<6x8xf32>
    %356 = tpu.matmul %355, %329, %cst_96 {dimension_numbers = #tpu.dot_dimension_numbers<[1], [1], [0], [0], [0, 0, 1, 0], [], []>} : vector<6x128xf32>, vector<8x128xf32>, vector<6x8xf32> -> vector<6x8xf32>
    %357 = vector.extract_strided_slice %214 {offsets = [0, 24], sizes = [6, 8], strides = [1, 1]} : vector<6x34xf32> to vector<6x8xf32>
    %358 = arith.mulf %326, %326 : vector<6x128xf32>
    %cst_97 = arith.constant dense<0.000000e+00> : vector<6x8xf32>
    %359 = tpu.matmul %358, %329, %cst_97 {dimension_numbers = #tpu.dot_dimension_numbers<[1], [1], [0], [0], [0, 0, 1, 0], [], []>} : vector<6x128xf32>, vector<8x128xf32>, vector<6x8xf32> -> vector<6x8xf32>
    %360 = arith.mulf %357, %359 : vector<6x8xf32>
    %cst_98 = arith.constant 1.000000e-24 : f32
    %361 = vector.broadcast %cst_98 : f32 to vector<6x8xf32>
    %362 = arith.maximumf %360, %361 : vector<6x8xf32>
    %363 = math.rsqrt %362 : vector<6x8xf32>
    %364 = arith.mulf %356, %363 : vector<6x8xf32>
    %365 = tpu.concatenate %344, %264, %354, %364 in 1 : vector<6x8xf32>, vector<6x8xf32>, vector<6x8xf32>, vector<6x8xf32> -> vector<6x32xf32>
    %cst_99 = arith.constant 0.000000e+00 : f32
    %366 = vector.broadcast %cst_99 : f32 to vector<6x96xf32>
    %367 = tpu.concatenate %365, %366 in 1 : vector<6x32xf32>, vector<6x96xf32> -> vector<6x128xf32>
    %c0_100 = arith.constant 0 : index
    %c0_101 = arith.constant 0 : index
    %c0_102 = arith.constant 0 : index
    %368 = vector.load %arg5[%c0_100, %c0_101, %c0_102] : memref<1x6x128xf32, #tpu.memory_space<vmem>>, vector<1x6x128xf32>
    %369 = vector.shape_cast %368 : vector<1x6x128xf32> to vector<6x128xf32>
    %370 = vector.shape_cast %367 : vector<6x128xf32> to vector<1x6x128xf32>
    tpu.vector_store %arg5[%c0_100, %c0_101, %c0_102], %370 {strides = array<i32>} : memref<1x6x128xf32, #tpu.memory_space<vmem>>, vector<1x6x128xf32>,
    return
  }
  func.func @transform_0(%arg0: i32) -> (i32, i32, i32) {
    %c0_i32 = arith.constant 0 : i32
    %c0_i32_0 = arith.constant 0 : i32
    %c0_i32_1 = arith.constant 0 : i32
    return %arg0, %c0_i32, %c0_i32_0 : i32, i32, i32
  }
  func.func @transform_1(%arg0: i32) -> (i32, i32, i32) {
    %c0_i32 = arith.constant 0 : i32
    %c0_i32_0 = arith.constant 0 : i32
    %c0_i32_1 = arith.constant 0 : i32
    return %arg0, %c0_i32, %c0_i32_0 : i32, i32, i32
  }
  func.func @transform_2(%arg0: i32) -> (i32, i32) {
    %c0_i32 = arith.constant 0 : i32
    %c0_i32_0 = arith.constant 0 : i32
    %c0_i32_1 = arith.constant 0 : i32
    return %c0_i32, %c0_i32_0 : i32, i32
  }
  func.func @transform_3(%arg0: i32) -> (i32, i32, i32) {
    %c0_i32 = arith.constant 0 : i32
    %c0_i32_0 = arith.constant 0 : i32
    %c0_i32_1 = arith.constant 0 : i32
    return %arg0, %c0_i32, %c0_i32_0 : i32, i32, i32
  }
  func.func @transform_4(%arg0: i32) -> (i32, i32, i32) {
    %c0_i32 = arith.constant 0 : i32
    %c0_i32_0 = arith.constant 0 : i32
    %c0_i32_1 = arith.constant 0 : i32
    return %arg0, %c0_i32, %c0_i32_0 : i32, i32, i32
  }
}

</mosaic_0001>

<llo_original>
// kernel: custom-call.14
$region0: #{custom-call.14}
  %s0 = inlined_call_operand.vmem [shape: bf16[2,16], index: 0, kind: output, shape index: {}]

// kernel: custom-call.15
$region0: #{custom-call.15}
  %s0 = inlined_call_operand.vmem [shape: f32[2,16], index: 0, kind: output, shape index: {}]

// kernel: mul.56
$region0: #{mul.56}
  #allocation0 [shape = 's32[1]{0}', space=sflag, size = 0x4, scoped, tag = 'scoped memory for mul.56']
  %s0 = inlined_call_operand.vmem [shape: f32[4,16], index: 0, kind: input, shape index: {}, may-alias: {0,1}]
  %s1 = inlined_call_operand.vmem [shape: f32[4,16], index: 1, kind: input, shape index: {}, may-alias: {0,1}]
  %s2 = inlined_call_operand.vmem [shape: f32[4,16], index: 2, kind: output, shape index: {}]
  %v3 = vld [vmem:[%s0] sm:$0xf]
  %v4 = vld [vmem:[%s1] sm:$0xf]
  %5 = xla_tuple %v3, %v4
  %6 = xla_tuple %5
  %v7 = vmul.f32 %v3, %v4
  %8 = xla_tuple %v7
  %9 = vst [vmem:[%s2] sm:$0xf] %v7

// kernel: bi_mpm_forward.1
$region0: #{bi_mpm_forward.1}
  #allocation0 [shape = 'u32[]', space=smem, size = 0x4, offset = 0x4, fixed_abs, tag = 'smem constant byte address 0x4 - core index']
  #allocation1 [shape = 'u32[72,128]{1,0:T(1,128)}', space=vmem, size = 0x9000, scoped, tag = 'internal scratch']
  %s0 = inlined_call_operand.vmem [shape: f32[2,8,128], index: 0, kind: input, shape index: {}]
  %s1 = inlined_call_operand.vmem [shape: f32[2,6,128], index: 1, kind: input, shape index: {}]
  %s2 = inlined_call_operand.vmem [shape: f32[34,128], index: 2, kind: input, shape index: {}]
  %s3 = inlined_call_operand.vmem [shape: f32[2,8,128], index: 3, kind: output, shape index: {0}]
  %s4 = inlined_call_operand.vmem [shape: f32[2,6,128], index: 4, kind: output, shape index: {1}]
  %5 = xla_tuple %s3, %s4
  %s6 = sld [smem:[#allocation0]]
  $region53: #{bi_mpm_forward.1} parent=0
    _
  %s8 = ssub.s32 1, %s6
  %s9 = scalar_select 0, %s8, %s6
  loop: start=0, step=1, limit=4
  $region2: #{bi_mpm_forward.1} parent=0 // loop_pre_header
    _
  $region3: #{bi_mpm_forward.1} parent=0 // loop_header
    %s11 = sphi 0, %s15
    %p12 = scmp.ge.s32.totalorder %s11, 4
    %s21 = sphi 0, %s23
    %s24 = sphi 0, %s21
    %s25 = sphi 0, %s24
    %s41 = sphi 0, %s25
    %s47 = sphi 0, %s49
    %s50 = sphi 0, %s47
    %s51 = sphi 0, %s50
    %s67 = sphi 0, %s51
    %s71 = sphi 0, %s71
    %s73 = sphi 0, %s71
    %s74 = sphi 0, %s73
    %s88 = sphi 0, %s74
    %s94 = sphi 0, %s96
    %s97 = sphi 0, %s94
    %s98 = sphi 0, %s97
    %s114 = sphi 0, %s98
    %s120 = sphi 0, %s122
    %s123 = sphi 0, %s120
    %s124 = sphi 0, %s123
    %s140 = sphi 0, %s124
  $region4: #{bi_mpm_forward.1} parent=0 // loop_header_branch
    %14 = sbr.rel (%p12) target = $region8
  $region5: #{bi_mpm_forward.1} parent=0 // loop_body
    %s16 = ssub.s32 %s11, 1
    %s17 = ssub.s32 %s11, 2
    %s18 = sadd.s32 %s11, 1
    %s19 = ssub.s32 %s11, %s18
    %p20 = scmp.eq.s32.totalorder %s19, 0
    %s22 = sadd.s32 %s21, 1
    %s23 = scalar_select %p20, %s21, %s22
    %p26 = pneg %p20
    %p27 = scmp.eq.s32.totalorder %s11, 1
    %p28 = por %p26, %p27
    %p29 = scmp.ne.s32.totalorder %s21, %s24
    %p30 = scmp.eq.s32.totalorder %s11, 0
    %p31 = por %p29, %p30
    %p32 = scmp.ne.s32.totalorder %s21, %s24
    %p33 = scmp.eq.s32.totalorder %s16, 1
    %p34 = por %p32, %p33
    %p35 = scmp.ne.s32.totalorder %s24, %s25
    %p36 = scmp.eq.s32.totalorder %s16, 0
    %p37 = por %p35, %p36
    %p38 = scmp.ne.s32.totalorder %s24, %s25
    %p39 = scmp.eq.s32.totalorder %s17, 1
    %p40 = por %p38, %p39
    %p42 = scmp.ne.s32.totalorder %s25, %s41
    %p43 = scmp.eq.s32.totalorder %s17, 0
    %p44 = por %p42, %p43
    %s45 = ssub.s32 %s11, %s18
    %p46 = scmp.eq.s32.totalorder %s45, 0
    %s48 = sadd.s32 %s47, 1
    %s49 = scalar_select %p46, %s47, %s48
    %p52 = pneg %p46
    %p53 = scmp.eq.s32.totalorder %s11, 1
    %p54 = por %p52, %p53
    %p55 = scmp.ne.s32.totalorder %s47, %s50
    %p56 = scmp.eq.s32.totalorder %s11, 0
    %p57 = por %p55, %p56
    %p58 = scmp.ne.s32.totalorder %s47, %s50
    %p59 = scmp.eq.s32.totalorder %s16, 1
    %p60 = por %p58, %p59
    %p61 = scmp.ne.s32.totalorder %s50, %s51
    %p62 = scmp.eq.s32.totalorder %s16, 0
    %p63 = por %p61, %p62
    %p64 = scmp.ne.s32.totalorder %s50, %s51
    %p65 = scmp.eq.s32.totalorder %s17, 1
    %p66 = por %p64, %p65
    %p68 = scmp.ne.s32.totalorder %s51, %s67
    %p69 = scmp.eq.s32.totalorder %s17, 0
    %p70 = por %p68, %p69
    %s72 = sadd.s32 %s71, 1
    %p75 = scmp.eq.s32.totalorder %s11, 1
    %p76 = scmp.ne.s32.totalorder %s71, %s73
    %p77 = scmp.eq.s32.totalorder %s11, 0
    %p78 = por %p76, %p77
    %p79 = scmp.ne.s32.totalorder %s71, %s73
    %p80 = scmp.eq.s32.totalorder %s16, 1
    %p81 = por %p79, %p80
    %p82 = scmp.ne.s32.totalorder %s73, %s74
    %p83 = scmp.eq.s32.totalorder %s16, 0
    %p84 = por %p82, %p83
    %p85 = scmp.ne.s32.totalorder %s73, %s74
    %p86 = scmp.eq.s32.totalorder %s17, 1
    %p87 = por %p85, %p86
    %p89 = scmp.ne.s32.totalorder %s74, %s88
    %p90 = scmp.eq.s32.totalorder %s17, 0
    %p91 = por %p89, %p90
    %s92 = ssub.s32 %s11, %s18
    %p93 = scmp.eq.s32.totalorder %s92, 0
    %s95 = sadd.s32 %s94, 1
    %s96 = scalar_select %p93, %s94, %s95
    %p99 = pneg %p93
    %p100 = scmp.eq.s32.totalorder %s11, 1
    %p101 = por %p99, %p100
    %p102 = scmp.ne.s32.totalorder %s94, %s97
    %p103 = scmp.eq.s32.totalorder %s11, 0
    %p104 = por %p102, %p103
    %p105 = scmp.ne.s32.totalorder %s94, %s97
    %p106 = scmp.eq.s32.totalorder %s16, 1
    %p107 = por %p105, %p106
    %p108 = scmp.ne.s32.totalorder %s97, %s98
    %p109 = scmp.eq.s32.totalorder %s16, 0
    %p110 = por %p108, %p109
    %p111 = scmp.ne.s32.totalorder %s97, %s98
    %p112 = scmp.eq.s32.totalorder %s17, 1
    %p113 = por %p111, %p112
    %p115 = scmp.ne.s32.totalorder %s98, %s114
    %p116 = scmp.eq.s32.totalorder %s17, 0
    %p117 = por %p115, %p116
    %s118 = ssub.s32 %s11, %s18
    %p119 = scmp.eq.s32.totalorder %s118, 0
    %s121 = sadd.s32 %s120, 1
    %s122 = scalar_select %p119, %s120, %s121
    %p125 = pneg %p119
    %p126 = scmp.eq.s32.totalorder %s11, 1
    %p127 = por %p125, %p126
    %p128 = scmp.ne.s32.totalorder %s120, %s123
    %p129 = scmp.eq.s32.totalorder %s11, 0
    %p130 = por %p128, %p129
    %p131 = scmp.ne.s32.totalorder %s120, %s123
    %p132 = scmp.eq.s32.totalorder %s16, 1
    %p133 = por %p131, %p132
    %p134 = scmp.ne.s32.totalorder %s123, %s124
    %p135 = scmp.eq.s32.totalorder %s16, 0
    %p136 = por %p134, %p135
    %p137 = scmp.ne.s32.totalorder %s123, %s124
    %p138 = scmp.eq.s32.totalorder %s17, 1
    %p139 = por %p137, %p138
    %p141 = scmp.ne.s32.totalorder %s124, %s140
    %p142 = scmp.eq.s32.totalorder %s17, 0
    %p143 = por %p141, %p142
    %p144 = scmp.le.s32.totalorder 1, %s11
    %p145 = scmp.lt.s32.totalorder %s11, 3
    %p146 = pnand %p144, %p145
    %p147 = pneg %p146
    // Predicated region
    $region9: #{bi_mpm_forward.1} parent=5 // pred_check
      _
    $region10: #{bi_mpm_forward.1} parent=5 // pred_check_branch
      %149 = sbr.rel (%p146) target = $region12
    $region11: #{bi_mpm_forward.1} parent=5 // pred_region
      %s150 = ssub.s32 %s11, 1
      // Predicated region
      $region13: #{bi_mpm_forward.1} parent=11 // pred_check
        %p151 = pneg %p84
      $region14: #{bi_mpm_forward.1} parent=11 // pred_check_branch
        %153 = sbr.rel (%p151) target = $region16
      $region15: #{bi_mpm_forward.1} parent=11 // pred_region
        _
      $region16: #{bi_mpm_forward.1} parent=11 // pred_fallthru
        _
    $region12: #{bi_mpm_forward.1} parent=5 // pred_fallthru
      _
    %p154 = scmp.lt.s32.totalorder %s11, 2
    // Predicated region
    $region17: #{bi_mpm_forward.1} parent=5 // pred_check
      %p155 = pneg %p154
    $region18: #{bi_mpm_forward.1} parent=5 // pred_check_branch
      %157 = sbr.rel (%p155) target = $region20
    $region19: #{bi_mpm_forward.1} parent=5 // pred_region
      // Predicated region
      $region21: #{bi_mpm_forward.1} parent=19 // pred_check
        %p158 = pneg %p31
      $region22: #{bi_mpm_forward.1} parent=19 // pred_check_branch
        %160 = sbr.rel (%p158) target = $region24
      $region23: #{bi_mpm_forward.1} parent=19 // pred_region
        %p161 = scmp.lt.s32.totalorder %s11, 1
        %s162 = scalar_select %p161, %s11, 1
        %s163 = smul.addr %s162, 8
        %s164 = scalar_lea.vmem %s0, %s163
      $region24: #{bi_mpm_forward.1} parent=19 // pred_fallthru
        _
      // Predicated region
      $region25: #{bi_mpm_forward.1} parent=19 // pred_check
        %p165 = pneg %p57
      $region26: #{bi_mpm_forward.1} parent=19 // pred_check_branch
        %167 = sbr.rel (%p165) target = $region28
      $region27: #{bi_mpm_forward.1} parent=19 // pred_region
        %p168 = scmp.lt.s32.totalorder %s11, 1
        %s169 = scalar_select %p168, %s11, 1
        %s170 = smul.addr %s169, 8
        %s171 = scalar_lea.vmem %s1, %s170
      $region28: #{bi_mpm_forward.1} parent=19 // pred_fallthru
        _
    $region20: #{bi_mpm_forward.1} parent=5 // pred_fallthru
      _
    %p172 = scmp.le.s32.totalorder 1, %s11
    %p173 = scmp.lt.s32.totalorder %s11, 3
    %p174 = pnand %p172, %p173
    %p175 = pneg %p174
    // Predicated region
    $region29: #{bi_mpm_forward.1} parent=5 // pred_check
      _
    $region30: #{bi_mpm_forward.1} parent=5 // pred_check_branch
      %177 = sbr.rel (%p174) target = $region32
    $region31: #{bi_mpm_forward.1} parent=5 // pred_region
      %s178 = ssub.s32 %s11, 1
      %p179 = scmp.lt.s32.totalorder %s16, 1
      %s180 = scalar_select %p179, %s16, 1
      %s181 = smul.addr %s180, 8
      %s182 = scalar_lea.vmem %s0, %s181
      %p183 = pneg %p37
      %p184 = pneg %p34
      %p185 = scmp.lt.s32.totalorder %s16, 1
      %s186 = scalar_select %p185, %s16, 1
      %s187 = smul.addr %s186, 8
      %s188 = scalar_lea.vmem %s1, %s187
      %p189 = pneg %p63
      %p190 = pneg %p60
      %p191 = pneg %p84
      %p192 = pneg %p81
      %p193 = pneg %p110
      %p194 = pneg %p107
      %p195 = scmp.lt.s32.totalorder %s16, 1
      %s196 = scalar_select %p195, %s16, 1
      %s197 = smul.addr %s196, 8
      %s198 = scalar_lea.vmem %s3, %s197
      %p199 = pneg %p136
      %p200 = pneg %p133
      %p201 = scmp.lt.s32.totalorder %s16, 1
      %s202 = scalar_select %p201, %s16, 1
      %s203 = smul.addr %s202, 8
      %s204 = scalar_lea.vmem %s4, %s203
      %p205 = scmp.lt.s32.totalorder %s16, 1
      %s206 = scalar_select %p205, %s16, 1
      %s207 = smul.addr %s206, 8
      %s208 = scalar_lea.vmem %s0, %s207
      %p209 = scmp.lt.s32.totalorder %s16, 1
      %s210 = scalar_select %p209, %s16, 1
      %s211 = smul.addr %s210, 8
      %s212 = scalar_lea.vmem %s1, %s211
      %p213 = scmp.lt.s32.totalorder %s16, 1
      %s214 = scalar_select %p213, %s16, 1
      %s215 = smul.addr %s214, 8
      %s216 = scalar_lea.vmem %s3, %s215
      %p217 = scmp.lt.s32.totalorder %s16, 1
      %s218 = scalar_select %p217, %s16, 1
      %s219 = smul.addr %s218, 8
      %s220 = scalar_lea.vmem %s4, %s219
      %v221 = vld [vmem:[%s2] sm:$0xff]
      %v222 = vld [vmem:[%s2 + $0x8] sm:$0xff]
      %v223 = vld [vmem:[%s2 + $0x10] sm:$0xff]
      %v224 = vld [vmem:[%s2 + $0x18] sm:$0xff]
      %v225 = vld [vmem:[%s2 + $0x20] sm:$0x3]
      %v226 = vld [vmem:[%s208] sm:$0xff]
      %v227 = vld [vmem:[%s212] sm:$0x3f]
      %v228 = vlaneseq
      %v229 = vand.u32 %v228, 127
      %vm230 = vcmp.lt.s32.totalorder %v229, 16
      %v231 = vlaneseq
      %v232 = vshrl.u32 %v231, 7
      %v233 = vsub.s32 7, %v232
      %vm234 = vcmp.eq.s32.totalorder %v229, %v233
      %v235 = vsel %vm234, 1, 0
      %v236 = vcvt.s32.f32 %v235
      %vm237 = vcmask 64512
      %v239 = vsel %vm237, %v236, 0
      %241 = vmatpush.msra.mxu0 0.0
      %242 = vmatpush.msra.mxu0 0.0
      %243 = vmatpush.msra.mxu0 0.0
      %244 = vmatpush.msra.mxu0 0.0
      %245 = vmatpush.msra.mxu0 0.0
      %246 = vmatpush.msra.mxu0 0.0
      %247 = vmatpush.msra.mxu0 0.0
      %248 = vmatpush.msra.mxu0 0.0
      %249 = vmatpush.msra.mxu0 0.0
      %250 = vmatpush.msra.mxu0 0.0
      %251 = vmatpush.msra.mxu0 0.0
      %252 = vmatpush.msra.mxu0 0.0
      %253 = vmatpush.msra.mxu0 0.0
      %254 = vmatpush.msra.mxu0 0.0
      %255 = vmatpush.msra.mxu0 0.0
      %256 = vmatpush.msra.mxu0 %v226
      %257 = vmatmul.f32.gmra.mxu0 %v239
      %v258 = vpop.f32.mrf.mxu0
      %v259 = vadd.f32 0.0, %v258
      %260 = vdwg.mxu0
      %v261 = vsel %vm230, 1, 0
      %vm262 = vcmp.eq.s32.totalorder %v261, 1
      %v263 = vsel %vm262, %v226, %v259
      %v264 = vsel %vm262, %v227, 0.0
      %v265 = vsel %vm262, 0.0, %v227
      %v267 = vrot.slane %v227, 3
      %v269 = vsel %vm230, %v227, %v267
      %v270 = vmul.f32 %v263, %v263
      %271 = vmatpush.xpose.msra.mxu0 0.0
      %272 = vmatpush.xpose.msra.mxu0 0.0
      %273 = vmatpush.xpose.msra.mxu0 0.0
      %274 = vmatpush.xpose.msra.mxu0 0.0
      %275 = vmatpush.xpose.msra.mxu0 0.0
      %276 = vmatpush.xpose.msra.mxu0 0.0
      %277 = vmatpush.xpose.msra.mxu0 0.0
      %278 = vmatpush.xpose.msra.mxu0 0.0
      %279 = vmatpush.xpose.msra.mxu0 0.0
      %280 = vmatpush.xpose.msra.mxu0 0.0
      %281 = vmatpush.xpose.msra.mxu0 0.0
      %282 = vmatpush.xpose.msra.mxu0 %v225
      %283 = vmatpush.xpose.msra.mxu0 %v224
      %284 = vmatpush.xpose.msra.mxu0 %v223
      %285 = vmatpush.xpose.msra.mxu0 %v222
      %286 = vmatpush.xpose.msra.mxu0 %v221
      %287 = vmatmul.f32.gmra.mxu0 %v270
      %v288 = vpop.f32.mrf.mxu0
      %v289 = vadd.f32 0.0, %v288
      %290 = vdwg.mxu0
      %v291 = vmul.f32 %v227, %v227
      %292 = vmatpush.xpose.msra.mxu0 0.0
      %293 = vmatpush.xpose.msra.mxu0 0.0
      %294 = vmatpush.xpose.msra.mxu0 0.0
      %295 = vmatpush.xpose.msra.mxu0 0.0
      %296 = vmatpush.xpose.msra.mxu0 0.0
      %297 = vmatpush.xpose.msra.mxu0 0.0
      %298 = vmatpush.xpose.msra.mxu0 0.0
      %299 = vmatpush.xpose.msra.mxu0 0.0
      %300 = vmatpush.xpose.msra.mxu0 0.0
      %301 = vmatpush.xpose.msra.mxu0 0.0
      %302 = vmatpush.xpose.msra.mxu0 0.0
      %303 = vmatpush.xpose.msra.mxu0 0.0
      %304 = vmatpush.xpose.msra.mxu0 0.0
      %305 = vmatpush.xpose.msra.mxu0 0.0
      %306 = vmatpush.xpose.msra.mxu0 0.0
      %307 = vmatpush.xpose.msra.mxu0 %v291
      %308 = vmatmul.f32.gmra.mxu0 %v221
      %v309 = vpop.f32.mrf.mxu0
      %310 = vmatmul.f32.gmra.mxu0 %v222
      %v311 = vpop.f32.mrf.mxu0
      %v312 = vadd.f32 0.0, %v311
      %313 = vmatmul.f32.gmra.mxu0 %v223
      %v314 = vpop.f32.mrf.mxu0
      %315 = vmatmul.f32.gmra.mxu0 %v224
      %v316 = vpop.f32.mrf.mxu0
      %317 = vmatmul.f32.gmra.mxu0 %v225
      %v318 = vpop.f32.mrf.mxu0
      %v319 = vadd.f32 0.0, %v318
      %320 = vdwg.mxu0
      %v321 = vmax.f32 %v289, 1e-12
      %v322 = vrsqrt.pop %v321
      %v323 = vmul.f32 %v322, %v321
      %v324 = vmul.f32 %v323, %v322
      %v325 = vmul.f32 0.5, %v324
      %v326 = vsub.f32 1.5, %v325
      %v327 = vmul.f32 %v322, %v326
      %vm328 = vweird.f32 %v321
      %vm329 = vweird.f32 %v322
      %vm330 = vmor %vm328, %vm329
      %v331 = vsel %vm330, %v322, %v327
      %v332 = vmax.f32 %v319, 1e-12
      %v333 = vrsqrt.pop %v332
      %v334 = vmul.f32 %v333, %v332
      %v335 = vmul.f32 %v334, %v333
      %v336 = vmul.f32 0.5, %v335
      %v337 = vsub.f32 1.5, %v336
      %v338 = vmul.f32 %v333, %v337
      %vm339 = vweird.f32 %v332
      %vm340 = vweird.f32 %v333
      %vm341 = vmor %vm339, %vm340
      %v342 = vsel %vm341, %v333, %v338
      %343 = vmatpush.xpose.msra.mxu0 0.0
      %344 = vmatpush.xpose.msra.mxu0 0.0
      %345 = vmatpush.xpose.msra.mxu0 0.0
      %346 = vmatpush.xpose.msra.mxu0 0.0
      %347 = vmatpush.xpose.msra.mxu0 0.0
      %348 = vmatpush.xpose.msra.mxu0 0.0
      %349 = vmatpush.xpose.msra.mxu0 0.0
      %350 = vmatpush.xpose.msra.mxu0 0.0
      %351 = vmatpush.xpose.msra.mxu0 0.0
      %352 = vmatpush.xpose.msra.mxu0 0.0
      %353 = vmatpush.xpose.msra.mxu0 0.0
      %354 = vmatpush.xpose.msra.mxu0 0.0
      %355 = vmatpush.xpose.msra.mxu0 0.0
      %356 = vmatpush.xpose.msra.mxu0 0.0
      %357 = vmatpush.xpose.msra.mxu0 0.0
      %358 = vmatpush.xpose.msra.mxu0 %v264
      %359 = vmatmul.f32.gmra.mxu0 %v263
      %v360 = vpop.f32.mrf.mxu0
      %v361 = vadd.f32 0.0, %v360
      %362 = vdwg.mxu0
      %364 = vset.pattern.permute.xlu0 32
      %365 = vperm.xlu0 %364, %v331
      %v366 = vpop.permute.xlu0 %365
      %v368 = vmul.f32 %v361, %v366
      %v369 = vperm.slane %v342, 0
      %v370 = vmul.f32 %v368, %v369
      %371 = vmatpush.xpose.msra.mxu0 0.0
      %372 = vmatpush.xpose.msra.mxu0 0.0
      %373 = vmatpush.xpose.msra.mxu0 0.0
      %374 = vmatpush.xpose.msra.mxu0 0.0
      %375 = vmatpush.xpose.msra.mxu0 0.0
      %376 = vmatpush.xpose.msra.mxu0 0.0
      %377 = vmatpush.xpose.msra.mxu0 0.0
      %378 = vmatpush.xpose.msra.mxu0 0.0
      %379 = vmatpush.xpose.msra.mxu0 0.0
      %380 = vmatpush.xpose.msra.mxu0 0.0
      %381 = vmatpush.xpose.msra.mxu0 0.0
      %382 = vmatpush.xpose.msra.mxu0 0.0
      %383 = vmatpush.xpose.msra.mxu0 0.0
      %384 = vmatpush.xpose.msra.mxu0 0.0
      %385 = vmatpush.xpose.msra.mxu0 0.0
      %386 = vmatpush.xpose.msra.mxu0 %v265
      %387 = vmatmul.f32.gmra.mxu0 %v263
      %v388 = vpop.f32.mrf.mxu0
      %v389 = vadd.f32 0.0, %v388
      %390 = vdwg.mxu0
      %391 = vset.pattern.permute.xlu0 33
      %392 = vperm.xlu0 %391, %v331
      %v393 = vpop.permute.xlu0 %392
      %v395 = vmul.f32 %v389, %v393
      %v396 = vperm.slane %v342, 1
      %v397 = vmul.f32 %v395, %v396
      %v399 = vrot.slane %v263, 1
      %v400 = vrot.slane %v263, 2
      %v401 = vrot.slane %v263, 3
      %v402 = vrot.slane %v263, 4
      %v403 = vrot.slane %v263, 5
      %v404 = vrot.slane %v263, 6
      %v405 = vrot.slane %v263, 7
      %v406 = vperm.slane %v263, 0
      %v407 = vperm.slane %v399, 0
      %v408 = vperm.slane %v400, 0
      %v409 = vperm.slane %v401, 0
      %v410 = vperm.slane %v402, 0
      %v411 = vperm.slane %v403, 0
      %v412 = vperm.slane %v404, 0
      %v413 = vperm.slane %v405, 0
      %v422 = vmul.f32 %v406, %v222
      %v423 = vmul.f32 %v407, %v222
      %v424 = vmul.f32 %v408, %v222
      %v425 = vmul.f32 %v409, %v222
      %v426 = vmul.f32 %v410, %v222
      %v427 = vmul.f32 %v411, %v222
      %v428 = vmul.f32 %v412, %v222
      %v429 = vmul.f32 %v413, %v222
      %430 = vmatpush.xpose.msra.mxu0 0.0
      %431 = vmatpush.xpose.msra.mxu0 0.0
      %432 = vmatpush.xpose.msra.mxu0 0.0
      %433 = vmatpush.xpose.msra.mxu0 0.0
      %434 = vmatpush.xpose.msra.mxu0 0.0
      %435 = vmatpush.xpose.msra.mxu0 0.0
      %436 = vmatpush.xpose.msra.mxu0 0.0
      %437 = vmatpush.xpose.msra.mxu0 0.0
      %438 = vmatpush.xpose.msra.mxu0 0.0
      %439 = vmatpush.xpose.msra.mxu0 0.0
      %440 = vmatpush.xpose.msra.mxu0 0.0
      %441 = vmatpush.xpose.msra.mxu0 0.0
      %442 = vmatpush.xpose.msra.mxu0 0.0
      %443 = vmatpush.xpose.msra.mxu0 0.0
      %444 = vmatpush.xpose.msra.mxu0 0.0
      %445 = vmatpush.xpose.msra.mxu0 %v227
      %446 = vmatmul.f32.gmra.mxu0 %v422
      %v447 = vpop.f32.mrf.mxu0
      %v448 = vadd.f32 0.0, %v447
      %449 = vmatmul.f32.gmra.mxu0 %v423
      %v450 = vpop.f32.mrf.mxu0
      %v451 = vadd.f32 0.0, %v450
      %452 = vmatmul.f32.gmra.mxu0 %v424
      %v453 = vpop.f32.mrf.mxu0
      %v454 = vadd.f32 0.0, %v453
      %455 = vmatmul.f32.gmra.mxu0 %v425
      %v456 = vpop.f32.mrf.mxu0
      %v457 = vadd.f32 0.0, %v456
      %458 = vmatmul.f32.gmra.mxu0 %v426
      %v459 = vpop.f32.mrf.mxu0
      %v460 = vadd.f32 0.0, %v459
      %461 = vmatmul.f32.gmra.mxu0 %v427
      %v462 = vpop.f32.mrf.mxu0
      %v463 = vadd.f32 0.0, %v462
      %464 = vmatmul.f32.gmra.mxu0 %v428
      %v465 = vpop.f32.mrf.mxu0
      %v466 = vadd.f32 0.0, %v465
      %467 = vmatmul.f32.gmra.mxu0 %v429
      %v468 = vpop.f32.mrf.mxu0
      %v469 = vadd.f32 0.0, %v468
      %470 = vdwg.mxu0
      %v471 = vmax.f32 %v312, 1e-12
      %v472 = vrsqrt.pop %v471
      %v473 = vmul.f32 %v472, %v471
      %v474 = vmul.f32 %v473, %v472
      %v475 = vmul.f32 0.5, %v474
      %v476 = vsub.f32 1.5, %v475
      %v477 = vmul.f32 %v472, %v476
      %vm478 = vweird.f32 %v471
      %vm479 = vweird.f32 %v472
      %vm480 = vmor %vm478, %vm479
      %v481 = vsel %vm480, %v472, %v477
      %v482 = vmul.f32 %v448, %v481
      %v483 = vmul.f32 %v451, %v481
      %v484 = vmul.f32 %v454, %v481
      %v485 = vmul.f32 %v457, %v481
      %v486 = vmul.f32 %v460, %v481
      %v487 = vmul.f32 %v463, %v481
      %v488 = vmul.f32 %v466, %v481
      %v489 = vmul.f32 %v469, %v481
      %vm490 = vcmask 48128
      %v491 = vsel %vm490, %v482, -inf
      %492 = vmax.xlane.f32.xlu0 %v491
      %v493 = vpop.xlane.xlu0 %492
      %v494 = vsel %vm490, %v483, -inf
      %495 = vmax.xlane.f32.xlu0 %v494
      %v496 = vpop.xlane.xlu0 %495
      %v497 = vsel %vm490, %v484, -inf
      %498 = vmax.xlane.f32.xlu0 %v497
      %v499 = vpop.xlane.xlu0 %498
      %v500 = vsel %vm490, %v485, -inf
      %501 = vmax.xlane.f32.xlu0 %v500
      %v502 = vpop.xlane.xlu0 %501
      %v503 = vsel %vm490, %v486, -inf
      %504 = vmax.xlane.f32.xlu0 %v503
      %v505 = vpop.xlane.xlu0 %504
      %v506 = vsel %vm490, %v487, -inf
      %507 = vmax.xlane.f32.xlu0 %v506
      %v508 = vpop.xlane.xlu0 %507
      %v509 = vsel %vm490, %v488, -inf
      %510 = vmax.xlane.f32.xlu0 %v509
      %v511 = vpop.xlane.xlu0 %510
      %v512 = vsel %vm490, %v489, -inf
      %513 = vmax.xlane.f32.xlu0 %v512
      %v514 = vpop.xlane.xlu0 %513
      %v515 = vperm.slane %v331, 0
      %v516 = vlaneseq
      %v517 = vshrl.u32 %v516, 7
      %v518 = vadd.s32 %v517, 8
      %519 = vset.pattern.permute.xlu0 %v518
      %520 = vperm.xlu0 %519, %v515
      %v521 = vpop.permute.xlu0 %520
      %v522 = vperm.slane %v331, 1
      %v523 = vlaneseq
      %v524 = vshrl.u32 %v523, 7
      %v525 = vadd.s32 %v524, 8
      %526 = vset.pattern.permute.xlu0 %v525
      %527 = vperm.xlu0 %526, %v522
      %v528 = vpop.permute.xlu0 %527
      %v529 = vperm.slane %v331, 2
      %v530 = vlaneseq
      %v531 = vshrl.u32 %v530, 7
      %v532 = vadd.s32 %v531, 8
      %533 = vset.pattern.permute.xlu0 %v532
      %534 = vperm.xlu0 %533, %v529
      %v535 = vpop.permute.xlu0 %534
      %v536 = vperm.slane %v331, 3
      %v537 = vlaneseq
      %v538 = vshrl.u32 %v537, 7
      %v539 = vadd.s32 %v538, 8
      %540 = vset.pattern.permute.xlu0 %v539
      %541 = vperm.xlu0 %540, %v536
      %v542 = vpop.permute.xlu0 %541
      %v543 = vperm.slane %v331, 4
      %v544 = vlaneseq
      %v545 = vshrl.u32 %v544, 7
      %v546 = vadd.s32 %v545, 8
      %547 = vset.pattern.permute.xlu0 %v546
      %548 = vperm.xlu0 %547, %v543
      %v549 = vpop.permute.xlu0 %548
      %v550 = vperm.slane %v331, 5
      %v551 = vlaneseq
      %v552 = vshrl.u32 %v551, 7
      %v553 = vadd.s32 %v552, 8
      %554 = vset.pattern.permute.xlu0 %v553
      %555 = vperm.xlu0 %554, %v550
      %v556 = vpop.permute.xlu0 %555
      %v557 = vperm.slane %v331, 6
      %v558 = vlaneseq
      %v559 = vshrl.u32 %v558, 7
      %v560 = vadd.s32 %v559, 8
      %561 = vset.pattern.permute.xlu0 %v560
      %562 = vperm.xlu0 %561, %v557
      %v563 = vpop.permute.xlu0 %562
      %v564 = vperm.slane %v331, 7
      %v565 = vlaneseq
      %v566 = vshrl.u32 %v565, 7
      %v567 = vadd.s32 %v566, 8
      %568 = vset.pattern.permute.xlu0 %v567
      %569 = vperm.xlu0 %568, %v564
      %v570 = vpop.permute.xlu0 %569
      %v579 = vmul.f32 %v493, %v521
      %v580 = vmul.f32 %v496, %v528
      %v581 = vmul.f32 %v499, %v535
      %v582 = vmul.f32 %v502, %v542
      %v583 = vmul.f32 %v505, %v549
      %v584 = vmul.f32 %v508, %v556
      %v585 = vmul.f32 %v511, %v563
      %v586 = vmul.f32 %v514, %v570
      %v587 = vsel %vm490, %v370, 0.0
      %588 = vadd.xlane.f32.xlu0 %v587
      %v589 = vpop.xlane.xlu0 %588
      %v590 = vand.u32 2147483647, %v589
      %vm591 = vcmp.lt.f32.partialorder %v590, 1e-08
      %vm592 = vcmp.ge.f32.partialorder %v589, 0.0
      %v593 = vsel %vm592, 1e-08, -1e-08
      %v594 = vsel %vm591, %v593, %v589
      %v595 = vrcp.pop %v594
      %v596 = vmul.f32 %v594, %v595
      %v597 = vsub.f32 1.0, %v596
      %v598 = vmul.f32 %v595, %v597
      %v599 = vadd.f32 %v595, %v598
      %vm600 = vweird.f32 %v594
      %vm601 = vweird.f32 %v595
      %vm602 = vmor %vm600, %vm601
      %v603 = vsel %vm602, %v595, %v599
      %v604 = vand.u32 2147483647, %v594
      %vm605 = vcmp.eq.f32.partialorder %v604, 8.507059e+37
      %v606 = vand.u32 %v594, 2147483648
      %v607 = vor.u32 1.1754944e-38, %v606
      %v608 = vsel %vm605, %v607, %v603
      %v609 = vmul.f32 1.0, %v608
      %v610 = vmul.f32 %v370, %v609
      %v611 = vsel %vm490, %v397, 0.0
      %612 = vadd.xlane.f32.xlu0 %v611
      %v613 = vpop.xlane.xlu0 %612
      %v614 = vand.u32 2147483647, %v613
      %vm615 = vcmp.lt.f32.partialorder %v614, 1e-08
      %vm616 = vcmp.ge.f32.partialorder %v613, 0.0
      %v617 = vsel %vm616, 1e-08, -1e-08
      %v618 = vsel %vm615, %v617, %v613
      %v619 = vrcp.pop %v618
      %v620 = vmul.f32 %v618, %v619
      %v621 = vsub.f32 1.0, %v620
      %v622 = vmul.f32 %v619, %v621
      %v623 = vadd.f32 %v619, %v622
      %vm624 = vweird.f32 %v618
      %vm625 = vweird.f32 %v619
      %vm626 = vmor %vm624, %vm625
      %v627 = vsel %vm626, %v619, %v623
      %v628 = vand.u32 2147483647, %v618
      %vm629 = vcmp.eq.f32.partialorder %v628, 8.507059e+37
      %v630 = vand.u32 %v618, 2147483648
      %v631 = vor.u32 1.1754944e-38, %v630
      %v632 = vsel %vm629, %v631, %v627
      %v633 = vmul.f32 1.0, %v632
      %v634 = vmul.f32 %v397, %v633
      %v635 = vsel %vm490, %v370, -inf
      %636 = vmax.xlane.f32.xlu0 %v635
      %v637 = vpop.xlane.xlu0 %636
      %vm638 = vcmp.ge.f32.partialorder %v370, %v637
      %v639 = vsel %vm638, %v229, 6
      %v640 = vsel %vm490, %v639, 2147483647
      %v641 = vand.u32 %v640, 65535
      %v642 = vshra.s32 %v640, 16
      %v643 = vcvt.s32.f32 %v641
      %v644 = vcvt.s32.f32 %v642
      %645 = vmin.xlane.f32.xlu0 %v644
      %v646 = vpop.xlane.xlu0 %645
      %vm647 = vcmp.eq.f32.partialorder %v644, %v646
      %v648 = vsel %vm647, %v643, inf
      %649 = vmin.xlane.f32.xlu0 %v648
      %v650 = vpop.xlane.xlu0 %649
      %v651 = vcvt.f32.s32 %v650
      %v652 = vcvt.f32.s32 %v646
      %v653 = vshll.u32 %v652, 16
      %v654 = vadd.s32 %v653, %v651
      %vm655 = vcmp.eq.s32.totalorder %v229, %v654
      %v656 = vsel %vm655, 1, 0
      %v657 = vcvt.s32.f32 %v656
      %v658 = vsel %vm490, %v397, -inf
      %659 = vmax.xlane.f32.xlu0 %v658
      %v660 = vpop.xlane.xlu0 %659
      %vm661 = vcmp.ge.f32.partialorder %v397, %v660
      %v662 = vsel %vm661, %v229, 6
      %v663 = vsel %vm490, %v662, 2147483647
      %v664 = vand.u32 %v663, 65535
      %v665 = vshra.s32 %v663, 16
      %v666 = vcvt.s32.f32 %v664
      %v667 = vcvt.s32.f32 %v665
      %668 = vmin.xlane.f32.xlu0 %v667
      %v669 = vpop.xlane.xlu0 %668
      %vm670 = vcmp.eq.f32.partialorder %v667, %v669
      %v671 = vsel %vm670, %v666, inf
      %672 = vmin.xlane.f32.xlu0 %v671
      %v673 = vpop.xlane.xlu0 %672
      %v674 = vcvt.f32.s32 %v673
      %v675 = vcvt.f32.s32 %v669
      %v676 = vshll.u32 %v675, 16
      %v677 = vadd.s32 %v676, %v674
      %vm678 = vcmp.eq.s32.totalorder %v229, %v677
      %v679 = vsel %vm678, 1, 0
      %v680 = vcvt.s32.f32 %v679
      %v682 = vsel %vm490, %v634, 0
      %v685 = vsel %vm490, %v680, 0
      %vm687 = vcmask 1045504
      %v689 = vsel %vm687, %v265, 0
      %691 = vmatpush.msra.mxu0 0.0
      %692 = vmatpush.msra.mxu0 0.0
      %693 = vmatpush.msra.mxu0 0.0
      %694 = vmatpush.msra.mxu0 0.0
      %695 = vmatpush.msra.mxu0 0.0
      %696 = vmatpush.msra.mxu0 0.0
      %697 = vmatpush.msra.mxu0 0.0
      %698 = vmatpush.msra.mxu0 0.0
      %699 = vmatpush.msra.mxu0 0.0
      %700 = vmatpush.msra.mxu0 0.0
      %701 = vmatpush.msra.mxu0 0.0
      %702 = vmatpush.msra.mxu0 0.0
      %703 = vmatpush.msra.mxu0 0.0
      %704 = vmatpush.msra.mxu0 0.0
      %705 = vmatpush.msra.mxu0 0.0
      %706 = vmatpush.msra.mxu0 %v689
      %707 = vmatmul.f32.gmra.mxu0 %v682
      %v708 = vpop.f32.mrf.mxu0
      %v709 = vadd.f32 0.0, %v708
      %710 = vmatmul.f32.gmra.mxu0 %v685
      %v711 = vpop.f32.mrf.mxu0
      %v712 = vadd.f32 0.0, %v711
      %713 = vdwg.mxu0
      %v715 = vsel %vm490, %v610, 0
      %v718 = vsel %vm490, %v657, 0
      %v721 = vsel %vm687, %v264, 0
      %723 = vmatpush.msra.mxu0 0.0
      %724 = vmatpush.msra.mxu0 0.0
      %725 = vmatpush.msra.mxu0 0.0
      %726 = vmatpush.msra.mxu0 0.0
      %727 = vmatpush.msra.mxu0 0.0
      %728 = vmatpush.msra.mxu0 0.0
      %729 = vmatpush.msra.mxu0 0.0
      %730 = vmatpush.msra.mxu0 0.0
      %731 = vmatpush.msra.mxu0 0.0
      %732 = vmatpush.msra.mxu0 0.0
      %733 = vmatpush.msra.mxu0 0.0
      %734 = vmatpush.msra.mxu0 0.0
      %735 = vmatpush.msra.mxu0 0.0
      %736 = vmatpush.msra.mxu0 0.0
      %737 = vmatpush.msra.mxu0 0.0
      %738 = vmatpush.msra.mxu0 %v721
      %739 = vmatmul.f32.gmra.mxu0 %v715
      %v740 = vpop.f32.mrf.mxu0
      %v741 = vadd.f32 %v709, %v740
      %742 = vmatmul.f32.gmra.mxu0 %v718
      %v743 = vpop.f32.mrf.mxu0
      %v744 = vadd.f32 %v712, %v743
      %745 = vdwg.mxu0
      %v746 = vmul.f32 %v269, %v269
      %v748 = vrot.slane %v746, 5
      %750 = vmatpush.xpose.msra.mxu0 0.0
      %751 = vmatpush.xpose.msra.mxu0 0.0
      %752 = vmatpush.xpose.msra.mxu0 0.0
      %753 = vmatpush.xpose.msra.mxu0 0.0
      %754 = vmatpush.xpose.msra.mxu0 0.0
      %755 = vmatpush.xpose.msra.mxu0 0.0
      %756 = vmatpush.xpose.msra.mxu0 0.0
      %757 = vmatpush.xpose.msra.mxu0 0.0
      %758 = vmatpush.xpose.msra.mxu0 0.0
      %759 = vmatpush.xpose.msra.mxu0 0.0
      %760 = vmatpush.xpose.msra.mxu0 0.0
      %761 = vmatpush.xpose.msra.mxu0 0.0
      %762 = vmatpush.xpose.msra.mxu0 0.0
      %763 = vmatpush.xpose.msra.mxu0 0.0
      %764 = vmatpush.xpose.msra.mxu0 0.0
      %765 = vmatpush.xpose.msra.mxu0 %v221
      %766 = vmatmul.f32.gmra.mxu0 %v748
      %v767 = vpop.f32.mrf.mxu0
      %v768 = vadd.f32 0.0, %v767
      %769 = vdwg.mxu0
      %v770 = vperm.slane %v269, 5
      %v771 = vmul.f32 %v263, %v770
      %772 = vmatpush.xpose.msra.mxu0 0.0
      %773 = vmatpush.xpose.msra.mxu0 0.0
      %774 = vmatpush.xpose.msra.mxu0 0.0
      %775 = vmatpush.xpose.msra.mxu0 0.0
      %776 = vmatpush.xpose.msra.mxu0 0.0
      %777 = vmatpush.xpose.msra.mxu0 0.0
      %778 = vmatpush.xpose.msra.mxu0 0.0
      %779 = vmatpush.xpose.msra.mxu0 0.0
      %780 = vmatpush.xpose.msra.mxu0 0.0
      %781 = vmatpush.xpose.msra.mxu0 0.0
      %782 = vmatpush.xpose.msra.mxu0 0.0
      %783 = vmatpush.xpose.msra.mxu0 0.0
      %784 = vmatpush.xpose.msra.mxu0 0.0
      %785 = vmatpush.xpose.msra.mxu0 0.0
      %786 = vmatpush.xpose.msra.mxu0 0.0
      %787 = vmatpush.xpose.msra.mxu0 %v221
      %788 = vmatmul.f32.gmra.mxu0 %v771
      %v789 = vpop.f32.mrf.mxu0
      %v790 = vadd.f32 0.0, %v789
      %791 = vdwg.mxu0
      %v792 = vmul.f32 %v790, %v331
      %v793 = vmax.f32 %v768, 1e-12
      %v794 = vrsqrt.pop %v793
      %v795 = vmul.f32 %v794, %v793
      %v796 = vmul.f32 %v795, %v794
      %v797 = vmul.f32 0.5, %v796
      %v798 = vsub.f32 1.5, %v797
      %v799 = vmul.f32 %v794, %v798
      %vm800 = vweird.f32 %v793
      %vm801 = vweird.f32 %v794
      %vm802 = vmor %vm800, %vm801
      %v803 = vsel %vm802, %v794, %v799
      %v804 = vperm.slane %v803, 0
      %v805 = vmul.f32 %v792, %v804
      %v806 = vmul.f32 %v263, %v741
      %807 = vmatpush.xpose.msra.mxu0 0.0
      %808 = vmatpush.xpose.msra.mxu0 0.0
      %809 = vmatpush.xpose.msra.mxu0 0.0
      %810 = vmatpush.xpose.msra.mxu0 0.0
      %811 = vmatpush.xpose.msra.mxu0 0.0
      %812 = vmatpush.xpose.msra.mxu0 0.0
      %813 = vmatpush.xpose.msra.mxu0 0.0
      %814 = vmatpush.xpose.msra.mxu0 0.0
      %815 = vmatpush.xpose.msra.mxu0 0.0
      %816 = vmatpush.xpose.msra.mxu0 0.0
      %817 = vmatpush.xpose.msra.mxu0 0.0
      %818 = vmatpush.xpose.msra.mxu0 0.0
      %819 = vmatpush.xpose.msra.mxu0 0.0
      %820 = vmatpush.xpose.msra.mxu0 0.0
      %821 = vmatpush.xpose.msra.mxu0 0.0
      %822 = vmatpush.xpose.msra.mxu0 %v223
      %823 = vmatmul.f32.gmra.mxu0 %v806
      %v824 = vpop.f32.mrf.mxu0
      %v825 = vadd.f32 0.0, %v824
      %826 = vdwg.mxu0
      %v827 = vmul.f32 %v741, %v741
      %828 = vmatpush.xpose.msra.mxu0 0.0
      %829 = vmatpush.xpose.msra.mxu0 0.0
      %830 = vmatpush.xpose.msra.mxu0 0.0
      %831 = vmatpush.xpose.msra.mxu0 0.0
      %832 = vmatpush.xpose.msra.mxu0 0.0
      %833 = vmatpush.xpose.msra.mxu0 0.0
      %834 = vmatpush.xpose.msra.mxu0 0.0
      %835 = vmatpush.xpose.msra.mxu0 0.0
      %836 = vmatpush.xpose.msra.mxu0 0.0
      %837 = vmatpush.xpose.msra.mxu0 0.0
      %838 = vmatpush.xpose.msra.mxu0 0.0
      %839 = vmatpush.xpose.msra.mxu0 0.0
      %840 = vmatpush.xpose.msra.mxu0 0.0
      %841 = vmatpush.xpose.msra.mxu0 0.0
      %842 = vmatpush.xpose.msra.mxu0 0.0
      %843 = vmatpush.xpose.msra.mxu0 %v223
      %844 = vmatmul.f32.gmra.mxu0 %v827
      %v845 = vpop.f32.mrf.mxu0
      %v846 = vadd.f32 0.0, %v845
      %847 = vdwg.mxu0
      %849 = vrot.lane.b32.xlu0 %v846, 16
      %v850 = vpop.permute.xlu0 %849
      %v852 = vmul.f32 %v289, %v850
      %v853 = vmax.f32 %v852, 1e-24
      %v854 = vrsqrt.pop %v853
      %v855 = vmul.f32 %v854, %v853
      %v856 = vmul.f32 %v855, %v854
      %v857 = vmul.f32 0.5, %v856
      %v858 = vsub.f32 1.5, %v857
      %v859 = vmul.f32 %v854, %v858
      %vm860 = vweird.f32 %v853
      %vm861 = vweird.f32 %v854
      %vm862 = vmor %vm860, %vm861
      %v863 = vsel %vm862, %v854, %v859
      %865 = vrot.lane.b32.xlu0 %v863, 112
      %v866 = vpop.permute.xlu0 %865
      %v868 = vmul.f32 %v825, %v866
      %v869 = vmul.f32 %v263, %v744
      %870 = vmatpush.xpose.msra.mxu0 0.0
      %871 = vmatpush.xpose.msra.mxu0 0.0
      %872 = vmatpush.xpose.msra.mxu0 0.0
      %873 = vmatpush.xpose.msra.mxu0 0.0
      %874 = vmatpush.xpose.msra.mxu0 0.0
      %875 = vmatpush.xpose.msra.mxu0 0.0
      %876 = vmatpush.xpose.msra.mxu0 0.0
      %877 = vmatpush.xpose.msra.mxu0 0.0
      %878 = vmatpush.xpose.msra.mxu0 0.0
      %879 = vmatpush.xpose.msra.mxu0 0.0
      %880 = vmatpush.xpose.msra.mxu0 0.0
      %881 = vmatpush.xpose.msra.mxu0 0.0
      %882 = vmatpush.xpose.msra.mxu0 0.0
      %883 = vmatpush.xpose.msra.mxu0 0.0
      %884 = vmatpush.xpose.msra.mxu0 0.0
      %885 = vmatpush.xpose.msra.mxu0 %v224
      %886 = vmatmul.f32.gmra.mxu0 %v869
      %v887 = vpop.f32.mrf.mxu0
      %v888 = vadd.f32 0.0, %v887
      %889 = vdwg.mxu0
      %v890 = vmul.f32 %v744, %v744
      %891 = vmatpush.xpose.msra.mxu0 0.0
      %892 = vmatpush.xpose.msra.mxu0 0.0
      %893 = vmatpush.xpose.msra.mxu0 0.0
      %894 = vmatpush.xpose.msra.mxu0 0.0
      %895 = vmatpush.xpose.msra.mxu0 0.0
      %896 = vmatpush.xpose.msra.mxu0 0.0
      %897 = vmatpush.xpose.msra.mxu0 0.0
      %898 = vmatpush.xpose.msra.mxu0 0.0
      %899 = vmatpush.xpose.msra.mxu0 0.0
      %900 = vmatpush.xpose.msra.mxu0 0.0
      %901 = vmatpush.xpose.msra.mxu0 0.0
      %902 = vmatpush.xpose.msra.mxu0 0.0
      %903 = vmatpush.xpose.msra.mxu0 0.0
      %904 = vmatpush.xpose.msra.mxu0 0.0
      %905 = vmatpush.xpose.msra.mxu0 0.0
      %906 = vmatpush.xpose.msra.mxu0 %v224
      %907 = vmatmul.f32.gmra.mxu0 %v890
      %v908 = vpop.f32.mrf.mxu0
      %v909 = vadd.f32 0.0, %v908
      %910 = vdwg.mxu0
      %912 = vrot.lane.b32.xlu0 %v909, 24
      %v913 = vpop.permute.xlu0 %912
      %v915 = vmul.f32 %v289, %v913
      %v916 = vmax.f32 %v915, 1e-24
      %v917 = vrsqrt.pop %v916
      %v918 = vmul.f32 %v917, %v916
      %v919 = vmul.f32 %v918, %v917
      %v920 = vmul.f32 0.5, %v919
      %v921 = vsub.f32 1.5, %v920
      %v922 = vmul.f32 %v917, %v921
      %vm923 = vweird.f32 %v916
      %vm924 = vweird.f32 %v917
      %vm925 = vmor %vm923, %vm924
      %v926 = vsel %vm925, %v917, %v922
      %928 = vrot.lane.b32.xlu0 %v926, 104
      %v929 = vpop.permute.xlu0 %928
      %v931 = vmul.f32 %v888, %v929
      %940 = vset.pattern.permute.xlu0 0
      %941 = vperm.xlu0 %940, %v579
      %v942 = vpop.permute.xlu0 %941
      %943 = vset.pattern.permute.xlu0 0
      %944 = vperm.xlu0 %943, %v580
      %v945 = vpop.permute.xlu0 %944
      %946 = vset.pattern.permute.xlu0 0
      %947 = vperm.xlu0 %946, %v581
      %v948 = vpop.permute.xlu0 %947
      %949 = vset.pattern.permute.xlu0 0
      %950 = vperm.xlu0 %949, %v582
      %v951 = vpop.permute.xlu0 %950
      %952 = vset.pattern.permute.xlu0 0
      %953 = vperm.xlu0 %952, %v583
      %v954 = vpop.permute.xlu0 %953
      %955 = vset.pattern.permute.xlu0 0
      %956 = vperm.xlu0 %955, %v584
      %v957 = vpop.permute.xlu0 %956
      %958 = vset.pattern.permute.xlu0 0
      %959 = vperm.xlu0 %958, %v585
      %v960 = vpop.permute.xlu0 %959
      %961 = vset.pattern.permute.xlu0 0
      %962 = vperm.xlu0 %961, %v586
      %v963 = vpop.permute.xlu0 %962
      %v964 = vadd.s32 %v229, 4294967288
      %v965 = vperm.slane %v942, %v964
      %v966 = vperm.slane %v945, %v964
      %v967 = vperm.slane %v948, %v964
      %v968 = vperm.slane %v951, %v964
      %v969 = vperm.slane %v954, %v964
      %v970 = vperm.slane %v957, %v964
      %v971 = vperm.slane %v960, %v964
      %v972 = vperm.slane %v963, %v964
      %vm973 = vcmask 1041409
      %v974 = vsel %vm973, %v966, %v965
      %vm975 = vcmask 1042434
      %v976 = vsel %vm975, %v967, %v974
      %vm977 = vcmask 1043459
      %v978 = vsel %vm977, %v968, %v976
      %vm979 = vcmask 1044484
      %v980 = vsel %vm979, %v969, %v978
      %vm981 = vcmask 1045509
      %v982 = vsel %vm981, %v970, %v980
      %vm983 = vcmask 1046534
      %v984 = vsel %vm983, %v971, %v982
      %vm985 = vcmask 1047559
      %v986 = vsel %vm985, %v972, %v984
      %989 = vrot.lane.b32.xlu0 %v868, 16
      %v990 = vpop.permute.xlu0 %989
      %993 = vrot.lane.b32.xlu0 %v931, 24
      %v994 = vpop.permute.xlu0 %993
      %v996 = vsel %vm237, %v805, %v986
      %vm997 = vcmask 130048
      %v998 = vsel %vm997, %v996, %v990
      %vm999 = vcmask 195584
      %v1000 = vsel %vm999, %v998, %v994
      %vm1001 = vcmask 261120
      %v1002 = vsel %vm1001, %v1000, 0.0
      %1003 = vst [vmem:[%s216] sm:$0xff] %v1002
      %v1004 = vsub.s32 5, %v232
      %vm1005 = vcmp.eq.s32.totalorder %v229, %v1004
      %v1006 = vsel %vm1005, 1, 0
      %v1007 = vcvt.s32.f32 %v1006
      %v1009 = vsel %vm490, %v1007, 0
      %v1011 = vsel %vm687, %v227, 0
      %1013 = vmatpush.msra.mxu0 0.0
      %1014 = vmatpush.msra.mxu0 0.0
      %1015 = vmatpush.msra.mxu0 0.0
      %1016 = vmatpush.msra.mxu0 0.0
      %1017 = vmatpush.msra.mxu0 0.0
      %1018 = vmatpush.msra.mxu0 0.0
      %1019 = vmatpush.msra.mxu0 0.0
      %1020 = vmatpush.msra.mxu0 0.0
      %1021 = vmatpush.msra.mxu0 0.0
      %1022 = vmatpush.msra.mxu0 0.0
      %1023 = vmatpush.msra.mxu0 0.0
      %1024 = vmatpush.msra.mxu0 0.0
      %1025 = vmatpush.msra.mxu0 0.0
      %1026 = vmatpush.msra.mxu0 0.0
      %1027 = vmatpush.msra.mxu0 0.0
      %1028 = vmatpush.msra.mxu0 %v1011
      %1029 = vmatmul.f32.gmra.mxu0 %v1009
      %v1030 = vpop.f32.mrf.mxu0
      %v1031 = vadd.f32 0.0, %v1030
      %1032 = vdwg.mxu0
      %v1033 = vsel %vm262, %v227, %v1031
      %v1034 = vsel %vm262, %v226, 0.0
      %v1035 = vsel %vm262, 0.0, %v226
      %v1037 = vrot.slane %v226, 1
      %v1039 = vsel %vm230, %v226, %v1037
      %v1040 = vmul.f32 %v1033, %v1033
      %1041 = vmatpush.xpose.msra.mxu0 0.0
      %1042 = vmatpush.xpose.msra.mxu0 0.0
      %1043 = vmatpush.xpose.msra.mxu0 0.0
      %1044 = vmatpush.xpose.msra.mxu0 0.0
      %1045 = vmatpush.xpose.msra.mxu0 0.0
      %1046 = vmatpush.xpose.msra.mxu0 0.0
      %1047 = vmatpush.xpose.msra.mxu0 0.0
      %1048 = vmatpush.xpose.msra.mxu0 0.0
      %1049 = vmatpush.xpose.msra.mxu0 0.0
      %1050 = vmatpush.xpose.msra.mxu0 0.0
      %1051 = vmatpush.xpose.msra.mxu0 0.0
      %1052 = vmatpush.xpose.msra.mxu0 %v225
      %1053 = vmatpush.xpose.msra.mxu0 %v224
      %1054 = vmatpush.xpose.msra.mxu0 %v223
      %1055 = vmatpush.xpose.msra.mxu0 %v222
      %1056 = vmatpush.xpose.msra.mxu0 %v221
      %1057 = vmatmul.f32.gmra.mxu0 %v1040
      %v1058 = vpop.f32.mrf.mxu0
      %v1059 = vadd.f32 0.0, %v1058
      %1060 = vdwg.mxu0
      %v1061 = vmul.f32 %v226, %v226
      %1062 = vmatpush.xpose.msra.mxu0 0.0
      %1063 = vmatpush.xpose.msra.mxu0 0.0
      %1064 = vmatpush.xpose.msra.mxu0 0.0
      %1065 = vmatpush.xpose.msra.mxu0 0.0
      %1066 = vmatpush.xpose.msra.mxu0 0.0
      %1067 = vmatpush.xpose.msra.mxu0 0.0
      %1068 = vmatpush.xpose.msra.mxu0 0.0
      %1069 = vmatpush.xpose.msra.mxu0 0.0
      %1070 = vmatpush.xpose.msra.mxu0 0.0
      %1071 = vmatpush.xpose.msra.mxu0 0.0
      %1072 = vmatpush.xpose.msra.mxu0 0.0
      %1073 = vmatpush.xpose.msra.mxu0 0.0
      %1074 = vmatpush.xpose.msra.mxu0 0.0
      %1075 = vmatpush.xpose.msra.mxu0 0.0
      %1076 = vmatpush.xpose.msra.mxu0 0.0
      %1077 = vmatpush.xpose.msra.mxu0 %v1061
      %1078 = vmatmul.f32.gmra.mxu0 %v221
      %v1079 = vpop.f32.mrf.mxu0
      %1080 = vmatmul.f32.gmra.mxu0 %v222
      %v1081 = vpop.f32.mrf.mxu0
      %v1082 = vadd.f32 0.0, %v1081
      %1083 = vmatmul.f32.gmra.mxu0 %v223
      %v1084 = vpop.f32.mrf.mxu0
      %1085 = vmatmul.f32.gmra.mxu0 %v224
      %v1086 = vpop.f32.mrf.mxu0
      %1087 = vmatmul.f32.gmra.mxu0 %v225
      %v1088 = vpop.f32.mrf.mxu0
      %v1089 = vadd.f32 0.0, %v1088
      %1090 = vdwg.mxu0
      %v1091 = vmax.f32 %v1059, 1e-12
      %v1092 = vrsqrt.pop %v1091
      %v1093 = vmul.f32 %v1092, %v1091
      %v1094 = vmul.f32 %v1093, %v1092
      %v1095 = vmul.f32 0.5, %v1094
      %v1096 = vsub.f32 1.5, %v1095
      %v1097 = vmul.f32 %v1092, %v1096
      %vm1098 = vweird.f32 %v1091
      %vm1099 = vweird.f32 %v1092
      %vm1100 = vmor %vm1098, %vm1099
      %v1101 = vsel %vm1100, %v1092, %v1097
      %v1102 = vmax.f32 %v1089, 1e-12
      %v1103 = vrsqrt.pop %v1102
      %v1104 = vmul.f32 %v1103, %v1102
      %v1105 = vmul.f32 %v1104, %v1103
      %v1106 = vmul.f32 0.5, %v1105
      %v1107 = vsub.f32 1.5, %v1106
      %v1108 = vmul.f32 %v1103, %v1107
      %vm1109 = vweird.f32 %v1102
      %vm1110 = vweird.f32 %v1103
      %vm1111 = vmor %vm1109, %vm1110
      %v1112 = vsel %vm1111, %v1103, %v1108
      %1113 = vmatpush.xpose.msra.mxu0 0.0
      %1114 = vmatpush.xpose.msra.mxu0 0.0
      %1115 = vmatpush.xpose.msra.mxu0 0.0
      %1116 = vmatpush.xpose.msra.mxu0 0.0
      %1117 = vmatpush.xpose.msra.mxu0 0.0
      %1118 = vmatpush.xpose.msra.mxu0 0.0
      %1119 = vmatpush.xpose.msra.mxu0 0.0
      %1120 = vmatpush.xpose.msra.mxu0 0.0
      %1121 = vmatpush.xpose.msra.mxu0 0.0
      %1122 = vmatpush.xpose.msra.mxu0 0.0
      %1123 = vmatpush.xpose.msra.mxu0 0.0
      %1124 = vmatpush.xpose.msra.mxu0 0.0
      %1125 = vmatpush.xpose.msra.mxu0 0.0
      %1126 = vmatpush.xpose.msra.mxu0 0.0
      %1127 = vmatpush.xpose.msra.mxu0 0.0
      %1128 = vmatpush.xpose.msra.mxu0 %v1034
      %1129 = vmatmul.f32.gmra.mxu0 %v1033
      %v1130 = vpop.f32.mrf.mxu0
      %v1131 = vadd.f32 0.0, %v1130
      %1132 = vdwg.mxu0
      %1134 = vset.pattern.permute.xlu0 32
      %1135 = vperm.xlu0 %1134, %v1101
      %v1136 = vpop.permute.xlu0 %1135
      %v1138 = vmul.f32 %v1131, %v1136
      %v1139 = vperm.slane %v1112, 0
      %v1140 = vmul.f32 %v1138, %v1139
      %1141 = vmatpush.xpose.msra.mxu0 0.0
      %1142 = vmatpush.xpose.msra.mxu0 0.0
      %1143 = vmatpush.xpose.msra.mxu0 0.0
      %1144 = vmatpush.xpose.msra.mxu0 0.0
      %1145 = vmatpush.xpose.msra.mxu0 0.0
      %1146 = vmatpush.xpose.msra.mxu0 0.0
      %1147 = vmatpush.xpose.msra.mxu0 0.0
      %1148 = vmatpush.xpose.msra.mxu0 0.0
      %1149 = vmatpush.xpose.msra.mxu0 0.0
      %1150 = vmatpush.xpose.msra.mxu0 0.0
      %1151 = vmatpush.xpose.msra.mxu0 0.0
      %1152 = vmatpush.xpose.msra.mxu0 0.0
      %1153 = vmatpush.xpose.msra.mxu0 0.0
      %1154 = vmatpush.xpose.msra.mxu0 0.0
      %1155 = vmatpush.xpose.msra.mxu0 0.0
      %1156 = vmatpush.xpose.msra.mxu0 %v1035
      %1157 = vmatmul.f32.gmra.mxu0 %v1033
      %v1158 = vpop.f32.mrf.mxu0
      %v1159 = vadd.f32 0.0, %v1158
      %1160 = vdwg.mxu0
      %1161 = vset.pattern.permute.xlu0 33
      %1162 = vperm.xlu0 %1161, %v1101
      %v1163 = vpop.permute.xlu0 %1162
      %v1165 = vmul.f32 %v1159, %v1163
      %v1166 = vperm.slane %v1112, 1
      %v1167 = vmul.f32 %v1165, %v1166
      %v1169 = vrot.slane %v1033, 1
      %v1170 = vrot.slane %v1033, 2
      %v1171 = vrot.slane %v1033, 3
      %v1172 = vrot.slane %v1033, 4
      %v1173 = vrot.slane %v1033, 5
      %v1174 = vperm.slane %v1033, 0
      %v1175 = vperm.slane %v1169, 0
      %v1176 = vperm.slane %v1170, 0
      %v1177 = vperm.slane %v1171, 0
      %v1178 = vperm.slane %v1172, 0
      %v1179 = vperm.slane %v1173, 0
      %v1186 = vmul.f32 %v1174, %v222
      %v1187 = vmul.f32 %v1175, %v222
      %v1188 = vmul.f32 %v1176, %v222
      %v1189 = vmul.f32 %v1177, %v222
      %v1190 = vmul.f32 %v1178, %v222
      %v1191 = vmul.f32 %v1179, %v222
      %1192 = vmatpush.xpose.msra.mxu0 0.0
      %1193 = vmatpush.xpose.msra.mxu0 0.0
      %1194 = vmatpush.xpose.msra.mxu0 0.0
      %1195 = vmatpush.xpose.msra.mxu0 0.0
      %1196 = vmatpush.xpose.msra.mxu0 0.0
      %1197 = vmatpush.xpose.msra.mxu0 0.0
      %1198 = vmatpush.xpose.msra.mxu0 0.0
      %1199 = vmatpush.xpose.msra.mxu0 0.0
      %1200 = vmatpush.xpose.msra.mxu0 0.0
      %1201 = vmatpush.xpose.msra.mxu0 0.0
      %1202 = vmatpush.xpose.msra.mxu0 0.0
      %1203 = vmatpush.xpose.msra.mxu0 0.0
      %1204 = vmatpush.xpose.msra.mxu0 0.0
      %1205 = vmatpush.xpose.msra.mxu0 0.0
      %1206 = vmatpush.xpose.msra.mxu0 0.0
      %1207 = vmatpush.xpose.msra.mxu0 %v226
      %1208 = vmatmul.f32.gmra.mxu0 %v1186
      %v1209 = vpop.f32.mrf.mxu0
      %v1210 = vadd.f32 0.0, %v1209
      %1211 = vmatmul.f32.gmra.mxu0 %v1187
      %v1212 = vpop.f32.mrf.mxu0
      %v1213 = vadd.f32 0.0, %v1212
      %1214 = vmatmul.f32.gmra.mxu0 %v1188
      %v1215 = vpop.f32.mrf.mxu0
      %v1216 = vadd.f32 0.0, %v1215
      %1217 = vmatmul.f32.gmra.mxu0 %v1189
      %v1218 = vpop.f32.mrf.mxu0
      %v1219 = vadd.f32 0.0, %v1218
      %1220 = vmatmul.f32.gmra.mxu0 %v1190
      %v1221 = vpop.f32.mrf.mxu0
      %v1222 = vadd.f32 0.0, %v1221
      %1223 = vmatmul.f32.gmra.mxu0 %v1191
      %v1224 = vpop.f32.mrf.mxu0
      %v1225 = vadd.f32 0.0, %v1224
      %1226 = vdwg.mxu0
      %v1227 = vmax.f32 %v1082, 1e-12
      %v1228 = vrsqrt.pop %v1227
      %v1229 = vmul.f32 %v1228, %v1227
      %v1230 = vmul.f32 %v1229, %v1228
      %v1231 = vmul.f32 0.5, %v1230
      %v1232 = vsub.f32 1.5, %v1231
      %v1233 = vmul.f32 %v1228, %v1232
      %vm1234 = vweird.f32 %v1227
      %vm1235 = vweird.f32 %v1228
      %vm1236 = vmor %vm1234, %vm1235
      %v1237 = vsel %vm1236, %v1228, %v1233
      %v1238 = vmul.f32 %v1210, %v1237
      %v1239 = vmul.f32 %v1213, %v1237
      %v1240 = vmul.f32 %v1216, %v1237
      %v1241 = vmul.f32 %v1219, %v1237
      %v1242 = vmul.f32 %v1222, %v1237
      %v1243 = vmul.f32 %v1225, %v1237
      %v1244 = vsel %vm237, %v1238, -inf
      %1245 = vmax.xlane.f32.xlu0 %v1244
      %v1246 = vpop.xlane.xlu0 %1245
      %v1247 = vsel %vm237, %v1239, -inf
      %1248 = vmax.xlane.f32.xlu0 %v1247
      %v1249 = vpop.xlane.xlu0 %1248
      %v1250 = vsel %vm237, %v1240, -inf
      %1251 = vmax.xlane.f32.xlu0 %v1250
      %v1252 = vpop.xlane.xlu0 %1251
      %v1253 = vsel %vm237, %v1241, -inf
      %1254 = vmax.xlane.f32.xlu0 %v1253
      %v1255 = vpop.xlane.xlu0 %1254
      %v1256 = vsel %vm237, %v1242, -inf
      %1257 = vmax.xlane.f32.xlu0 %v1256
      %v1258 = vpop.xlane.xlu0 %1257
      %v1259 = vsel %vm237, %v1243, -inf
      %1260 = vmax.xlane.f32.xlu0 %v1259
      %v1261 = vpop.xlane.xlu0 %1260
      %v1262 = vperm.slane %v1101, 0
      %v1263 = vlaneseq
      %v1264 = vshrl.u32 %v1263, 7
      %v1265 = vadd.s32 %v1264, 8
      %1266 = vset.pattern.permute.xlu0 %v1265
      %1267 = vperm.xlu0 %1266, %v1262
      %v1268 = vpop.permute.xlu0 %1267
      %v1269 = vperm.slane %v1101, 1
      %v1270 = vlaneseq
      %v1271 = vshrl.u32 %v1270, 7
      %v1272 = vadd.s32 %v1271, 8
      %1273 = vset.pattern.permute.xlu0 %v1272
      %1274 = vperm.xlu0 %1273, %v1269
      %v1275 = vpop.permute.xlu0 %1274
      %v1276 = vperm.slane %v1101, 2
      %v1277 = vlaneseq
      %v1278 = vshrl.u32 %v1277, 7
      %v1279 = vadd.s32 %v1278, 8
      %1280 = vset.pattern.permute.xlu0 %v1279
      %1281 = vperm.xlu0 %1280, %v1276
      %v1282 = vpop.permute.xlu0 %1281
      %v1283 = vperm.slane %v1101, 3
      %v1284 = vlaneseq
      %v1285 = vshrl.u32 %v1284, 7
      %v1286 = vadd.s32 %v1285, 8
      %1287 = vset.pattern.permute.xlu0 %v1286
      %1288 = vperm.xlu0 %1287, %v1283
      %v1289 = vpop.permute.xlu0 %1288
      %v1290 = vperm.slane %v1101, 4
      %v1291 = vlaneseq
      %v1292 = vshrl.u32 %v1291, 7
      %v1293 = vadd.s32 %v1292, 8
      %1294 = vset.pattern.permute.xlu0 %v1293
      %1295 = vperm.xlu0 %1294, %v1290
      %v1296 = vpop.permute.xlu0 %1295
      %v1297 = vperm.slane %v1101, 5
      %v1298 = vlaneseq
      %v1299 = vshrl.u32 %v1298, 7
      %v1300 = vadd.s32 %v1299, 8
      %1301 = vset.pattern.permute.xlu0 %v1300
      %1302 = vperm.xlu0 %1301, %v1297
      %v1303 = vpop.permute.xlu0 %1302
      %v1310 = vmul.f32 %v1246, %v1268
      %v1311 = vmul.f32 %v1249, %v1275
      %v1312 = vmul.f32 %v1252, %v1282
      %v1313 = vmul.f32 %v1255, %v1289
      %v1314 = vmul.f32 %v1258, %v1296
      %v1315 = vmul.f32 %v1261, %v1303
      %vm1316 = vcmask 62464
      %v1317 = vsel %vm1316, %v1140, 0.0
      %1318 = vadd.xlane.f32.xlu0 %v1317
      %v1319 = vpop.xlane.xlu0 %1318
      %v1320 = vand.u32 2147483647, %v1319
      %vm1321 = vcmp.lt.f32.partialorder %v1320, 1e-08
      %vm1322 = vcmp.ge.f32.partialorder %v1319, 0.0
      %v1323 = vsel %vm1322, 1e-08, -1e-08
      %v1324 = vsel %vm1321, %v1323, %v1319
      %v1325 = vrcp.pop %v1324
      %v1326 = vmul.f32 %v1324, %v1325
      %v1327 = vsub.f32 1.0, %v1326
      %v1328 = vmul.f32 %v1325, %v1327
      %v1329 = vadd.f32 %v1325, %v1328
      %vm1330 = vweird.f32 %v1324
      %vm1331 = vweird.f32 %v1325
      %vm1332 = vmor %vm1330, %vm1331
      %v1333 = vsel %vm1332, %v1325, %v1329
      %v1334 = vand.u32 2147483647, %v1324
      %vm1335 = vcmp.eq.f32.partialorder %v1334, 8.507059e+37
      %v1336 = vand.u32 %v1324, 2147483648
      %v1337 = vor.u32 1.1754944e-38, %v1336
      %v1338 = vsel %vm1335, %v1337, %v1333
      %v1339 = vmul.f32 1.0, %v1338
      %v1340 = vmul.f32 %v1140, %v1339
      %v1341 = vsel %vm1316, %v1167, 0.0
      %1342 = vadd.xlane.f32.xlu0 %v1341
      %v1343 = vpop.xlane.xlu0 %1342
      %v1344 = vand.u32 2147483647, %v1343
      %vm1345 = vcmp.lt.f32.partialorder %v1344, 1e-08
      %vm1346 = vcmp.ge.f32.partialorder %v1343, 0.0
      %v1347 = vsel %vm1346, 1e-08, -1e-08
      %v1348 = vsel %vm1345, %v1347, %v1343
      %v1349 = vrcp.pop %v1348
      %v1350 = vmul.f32 %v1348, %v1349
      %v1351 = vsub.f32 1.0, %v1350
      %v1352 = vmul.f32 %v1349, %v1351
      %v1353 = vadd.f32 %v1349, %v1352
      %vm1354 = vweird.f32 %v1348
      %vm1355 = vweird.f32 %v1349
      %vm1356 = vmor %vm1354, %vm1355
      %v1357 = vsel %vm1356, %v1349, %v1353
      %v1358 = vand.u32 2147483647, %v1348
      %vm1359 = vcmp.eq.f32.partialorder %v1358, 8.507059e+37
      %v1360 = vand.u32 %v1348, 2147483648
      %v1361 = vor.u32 1.1754944e-38, %v1360
      %v1362 = vsel %vm1359, %v1361, %v1357
      %v1363 = vmul.f32 1.0, %v1362
      %v1364 = vmul.f32 %v1167, %v1363
      %v1365 = vsel %vm1316, %v1140, -inf
      %1366 = vmax.xlane.f32.xlu0 %v1365
      %v1367 = vpop.xlane.xlu0 %1366
      %vm1368 = vcmp.ge.f32.partialorder %v1140, %v1367
      %v1369 = vsel %vm1368, %v229, 8
      %v1370 = vsel %vm1316, %v1369, 2147483647
      %v1371 = vand.u32 %v1370, 65535
      %v1372 = vshra.s32 %v1370, 16
      %v1373 = vcvt.s32.f32 %v1371
      %v1374 = vcvt.s32.f32 %v1372
      %1375 = vmin.xlane.f32.xlu0 %v1374
      %v1376 = vpop.xlane.xlu0 %1375
      %vm1377 = vcmp.eq.f32.partialorder %v1374, %v1376
      %v1378 = vsel %vm1377, %v1373, inf
      %1379 = vmin.xlane.f32.xlu0 %v1378
      %v1380 = vpop.xlane.xlu0 %1379
      %v1381 = vcvt.f32.s32 %v1380
      %v1382 = vcvt.f32.s32 %v1376
      %v1383 = vshll.u32 %v1382, 16
      %v1384 = vadd.s32 %v1383, %v1381
      %vm1385 = vcmp.eq.s32.totalorder %v229, %v1384
      %v1386 = vsel %vm1385, 1, 0
      %v1387 = vcvt.s32.f32 %v1386
      %v1389 = vrot.slane %v1387, 2
      %v1391 = vsel %vm687, %v1340, %v1389
      %v1392 = vsel %vm1316, %v1167, -inf
      %1393 = vmax.xlane.f32.xlu0 %v1392
      %v1394 = vpop.xlane.xlu0 %1393
      %vm1395 = vcmp.ge.f32.partialorder %v1167, %v1394
      %v1396 = vsel %vm1395, %v229, 8
      %v1397 = vsel %vm1316, %v1396, 2147483647
      %v1398 = vand.u32 %v1397, 65535
      %v1399 = vshra.s32 %v1397, 16
      %v1400 = vcvt.s32.f32 %v1398
      %v1401 = vcvt.s32.f32 %v1399
      %1402 = vmin.xlane.f32.xlu0 %v1401
      %v1403 = vpop.xlane.xlu0 %1402
      %vm1404 = vcmp.eq.f32.partialorder %v1401, %v1403
      %v1405 = vsel %vm1404, %v1400, inf
      %1406 = vmin.xlane.f32.xlu0 %v1405
      %v1407 = vpop.xlane.xlu0 %1406
      %v1408 = vcvt.f32.s32 %v1407
      %v1409 = vcvt.f32.s32 %v1403
      %v1410 = vshll.u32 %v1409, 16
      %v1411 = vadd.s32 %v1410, %v1408
      %vm1412 = vcmp.eq.s32.totalorder %v229, %v1411
      %v1413 = vsel %vm1412, 1, 0
      %v1414 = vcvt.s32.f32 %v1413
      %v1416 = vrot.slane %v1414, 2
      %v1418 = vsel %vm687, %v1364, %v1416
      %v1420 = vsel %vm237, %v1418, 0
      %v1422 = vsel %vm237, %v1416, 0
      %1424 = vmatpush.msra.mxu0 0.0
      %1425 = vmatpush.msra.mxu0 0.0
      %1426 = vmatpush.msra.mxu0 0.0
      %1427 = vmatpush.msra.mxu0 0.0
      %1428 = vmatpush.msra.mxu0 0.0
      %1429 = vmatpush.msra.mxu0 0.0
      %1430 = vmatpush.msra.mxu0 0.0
      %1431 = vmatpush.msra.mxu0 0.0
      %1432 = vmatpush.msra.mxu0 0.0
      %1433 = vmatpush.msra.mxu0 0.0
      %1434 = vmatpush.msra.mxu0 0.0
      %1435 = vmatpush.msra.mxu0 0.0
      %1436 = vmatpush.msra.mxu0 0.0
      %1437 = vmatpush.msra.mxu0 0.0
      %1438 = vmatpush.msra.mxu0 0.0
      %1439 = vmatpush.msra.mxu0 %v1035
      %1440 = vmatmul.f32.gmra.mxu0 %v1420
      %v1441 = vpop.f32.mrf.mxu0
      %v1442 = vadd.f32 0.0, %v1441
      %1443 = vmatmul.f32.gmra.mxu0 %v1422
      %v1444 = vpop.f32.mrf.mxu0
      %v1445 = vadd.f32 0.0, %v1444
      %1446 = vdwg.mxu0
      %v1448 = vsel %vm237, %v1391, 0
      %v1450 = vsel %vm237, %v1389, 0
      %1452 = vmatpush.msra.mxu0 0.0
      %1453 = vmatpush.msra.mxu0 0.0
      %1454 = vmatpush.msra.mxu0 0.0
      %1455 = vmatpush.msra.mxu0 0.0
      %1456 = vmatpush.msra.mxu0 0.0
      %1457 = vmatpush.msra.mxu0 0.0
      %1458 = vmatpush.msra.mxu0 0.0
      %1459 = vmatpush.msra.mxu0 0.0
      %1460 = vmatpush.msra.mxu0 0.0
      %1461 = vmatpush.msra.mxu0 0.0
      %1462 = vmatpush.msra.mxu0 0.0
      %1463 = vmatpush.msra.mxu0 0.0
      %1464 = vmatpush.msra.mxu0 0.0
      %1465 = vmatpush.msra.mxu0 0.0
      %1466 = vmatpush.msra.mxu0 0.0
      %1467 = vmatpush.msra.mxu0 %v1034
      %1468 = vmatmul.f32.gmra.mxu0 %v1448
      %v1469 = vpop.f32.mrf.mxu0
      %v1470 = vadd.f32 %v1442, %v1469
      %1471 = vmatmul.f32.gmra.mxu0 %v1450
      %v1472 = vpop.f32.mrf.mxu0
      %v1473 = vadd.f32 %v1445, %v1472
      %1474 = vdwg.mxu0
      %v1475 = vmul.f32 %v1039, %v1039
      %v1477 = vrot.slane %v1475, 7
      %1479 = vmatpush.xpose.msra.mxu0 0.0
      %1480 = vmatpush.xpose.msra.mxu0 0.0
      %1481 = vmatpush.xpose.msra.mxu0 0.0
      %1482 = vmatpush.xpose.msra.mxu0 0.0
      %1483 = vmatpush.xpose.msra.mxu0 0.0
      %1484 = vmatpush.xpose.msra.mxu0 0.0
      %1485 = vmatpush.xpose.msra.mxu0 0.0
      %1486 = vmatpush.xpose.msra.mxu0 0.0
      %1487 = vmatpush.xpose.msra.mxu0 0.0
      %1488 = vmatpush.xpose.msra.mxu0 0.0
      %1489 = vmatpush.xpose.msra.mxu0 0.0
      %1490 = vmatpush.xpose.msra.mxu0 0.0
      %1491 = vmatpush.xpose.msra.mxu0 0.0
      %1492 = vmatpush.xpose.msra.mxu0 0.0
      %1493 = vmatpush.xpose.msra.mxu0 0.0
      %1494 = vmatpush.xpose.msra.mxu0 %v221
      %1495 = vmatmul.f32.gmra.mxu0 %v1477
      %v1496 = vpop.f32.mrf.mxu0
      %v1497 = vadd.f32 0.0, %v1496
      %1498 = vdwg.mxu0
      %v1499 = vperm.slane %v1039, 7
      %v1500 = vmul.f32 %v1033, %v1499
      %1501 = vmatpush.xpose.msra.mxu0 0.0
      %1502 = vmatpush.xpose.msra.mxu0 0.0
      %1503 = vmatpush.xpose.msra.mxu0 0.0
      %1504 = vmatpush.xpose.msra.mxu0 0.0
      %1505 = vmatpush.xpose.msra.mxu0 0.0
      %1506 = vmatpush.xpose.msra.mxu0 0.0
      %1507 = vmatpush.xpose.msra.mxu0 0.0
      %1508 = vmatpush.xpose.msra.mxu0 0.0
      %1509 = vmatpush.xpose.msra.mxu0 0.0
      %1510 = vmatpush.xpose.msra.mxu0 0.0
      %1511 = vmatpush.xpose.msra.mxu0 0.0
      %1512 = vmatpush.xpose.msra.mxu0 0.0
      %1513 = vmatpush.xpose.msra.mxu0 0.0
      %1514 = vmatpush.xpose.msra.mxu0 0.0
      %1515 = vmatpush.xpose.msra.mxu0 0.0
      %1516 = vmatpush.xpose.msra.mxu0 %v221
      %1517 = vmatmul.f32.gmra.mxu0 %v1500
      %v1518 = vpop.f32.mrf.mxu0
      %v1519 = vadd.f32 0.0, %v1518
      %1520 = vdwg.mxu0
      %v1521 = vmul.f32 %v1519, %v1101
      %v1522 = vmax.f32 %v1497, 1e-12
      %v1523 = vrsqrt.pop %v1522
      %v1524 = vmul.f32 %v1523, %v1522
      %v1525 = vmul.f32 %v1524, %v1523
      %v1526 = vmul.f32 0.5, %v1525
      %v1527 = vsub.f32 1.5, %v1526
      %v1528 = vmul.f32 %v1523, %v1527
      %vm1529 = vweird.f32 %v1522
      %vm1530 = vweird.f32 %v1523
      %vm1531 = vmor %vm1529, %vm1530
      %v1532 = vsel %vm1531, %v1523, %v1528
      %v1533 = vperm.slane %v1532, 0
      %v1534 = vmul.f32 %v1521, %v1533
      %v1535 = vmul.f32 %v1033, %v1470
      %1536 = vmatpush.xpose.msra.mxu0 0.0
      %1537 = vmatpush.xpose.msra.mxu0 0.0
      %1538 = vmatpush.xpose.msra.mxu0 0.0
      %1539 = vmatpush.xpose.msra.mxu0 0.0
      %1540 = vmatpush.xpose.msra.mxu0 0.0
      %1541 = vmatpush.xpose.msra.mxu0 0.0
      %1542 = vmatpush.xpose.msra.mxu0 0.0
      %1543 = vmatpush.xpose.msra.mxu0 0.0
      %1544 = vmatpush.xpose.msra.mxu0 0.0
      %1545 = vmatpush.xpose.msra.mxu0 0.0
      %1546 = vmatpush.xpose.msra.mxu0 0.0
      %1547 = vmatpush.xpose.msra.mxu0 0.0
      %1548 = vmatpush.xpose.msra.mxu0 0.0
      %1549 = vmatpush.xpose.msra.mxu0 0.0
      %1550 = vmatpush.xpose.msra.mxu0 0.0
      %1551 = vmatpush.xpose.msra.mxu0 %v223
      %1552 = vmatmul.f32.gmra.mxu0 %v1535
      %v1553 = vpop.f32.mrf.mxu0
      %v1554 = vadd.f32 0.0, %v1553
      %1555 = vdwg.mxu0
      %v1556 = vmul.f32 %v1470, %v1470
      %1557 = vmatpush.xpose.msra.mxu0 0.0
      %1558 = vmatpush.xpose.msra.mxu0 0.0
      %1559 = vmatpush.xpose.msra.mxu0 0.0
      %1560 = vmatpush.xpose.msra.mxu0 0.0
      %1561 = vmatpush.xpose.msra.mxu0 0.0
      %1562 = vmatpush.xpose.msra.mxu0 0.0
      %1563 = vmatpush.xpose.msra.mxu0 0.0
      %1564 = vmatpush.xpose.msra.mxu0 0.0
      %1565 = vmatpush.xpose.msra.mxu0 0.0
      %1566 = vmatpush.xpose.msra.mxu0 0.0
      %1567 = vmatpush.xpose.msra.mxu0 0.0
      %1568 = vmatpush.xpose.msra.mxu0 0.0
      %1569 = vmatpush.xpose.msra.mxu0 0.0
      %1570 = vmatpush.xpose.msra.mxu0 0.0
      %1571 = vmatpush.xpose.msra.mxu0 0.0
      %1572 = vmatpush.xpose.msra.mxu0 %v223
      %1573 = vmatmul.f32.gmra.mxu0 %v1556
      %v1574 = vpop.f32.mrf.mxu0
      %v1575 = vadd.f32 0.0, %v1574
      %1576 = vdwg.mxu0
      %1578 = vrot.lane.b32.xlu0 %v1575, 16
      %v1579 = vpop.permute.xlu0 %1578
      %v1581 = vmul.f32 %v1059, %v1579
      %v1582 = vmax.f32 %v1581, 1e-24
      %v1583 = vrsqrt.pop %v1582
      %v1584 = vmul.f32 %v1583, %v1582
      %v1585 = vmul.f32 %v1584, %v1583
      %v1586 = vmul.f32 0.5, %v1585
      %v1587 = vsub.f32 1.5, %v1586
      %v1588 = vmul.f32 %v1583, %v1587
      %vm1589 = vweird.f32 %v1582
      %vm1590 = vweird.f32 %v1583
      %vm1591 = vmor %vm1589, %vm1590
      %v1592 = vsel %vm1591, %v1583, %v1588
      %1594 = vrot.lane.b32.xlu0 %v1592, 112
      %v1595 = vpop.permute.xlu0 %1594
      %v1597 = vmul.f32 %v1554, %v1595
      %vm1600 = vcmask 1041408
      %v1601 = vrot.slane %v1470, 6
      %v1602 = vrot.slane %v1473, 6
      %v1603 = vsel %vm1600, %v1601, %v1602
      %v1605 = vmul.f32 %v1033, %v1603
      %1606 = vmatpush.xpose.msra.mxu0 0.0
      %1607 = vmatpush.xpose.msra.mxu0 0.0
      %1608 = vmatpush.xpose.msra.mxu0 0.0
      %1609 = vmatpush.xpose.msra.mxu0 0.0
      %1610 = vmatpush.xpose.msra.mxu0 0.0
      %1611 = vmatpush.xpose.msra.mxu0 0.0
      %1612 = vmatpush.xpose.msra.mxu0 0.0
      %1613 = vmatpush.xpose.msra.mxu0 0.0
      %1614 = vmatpush.xpose.msra.mxu0 0.0
      %1615 = vmatpush.xpose.msra.mxu0 0.0
      %1616 = vmatpush.xpose.msra.mxu0 0.0
      %1617 = vmatpush.xpose.msra.mxu0 0.0
      %1618 = vmatpush.xpose.msra.mxu0 0.0
      %1619 = vmatpush.xpose.msra.mxu0 0.0
      %1620 = vmatpush.xpose.msra.mxu0 0.0
      %1621 = vmatpush.xpose.msra.mxu0 %v224
      %1622 = vmatmul.f32.gmra.mxu0 %v1605
      %v1623 = vpop.f32.mrf.mxu0
      %v1624 = vadd.f32 0.0, %v1623
      %1625 = vdwg.mxu0
      %v1626 = vmul.f32 %v1473, %v1473
      %v1629 = vrot.slane %v1556, 6
      %v1630 = vrot.slane %v1626, 6
      %v1631 = vsel %vm1600, %v1629, %v1630
      %1633 = vmatpush.xpose.msra.mxu0 0.0
      %1634 = vmatpush.xpose.msra.mxu0 0.0
      %1635 = vmatpush.xpose.msra.mxu0 0.0
      %1636 = vmatpush.xpose.msra.mxu0 0.0
      %1637 = vmatpush.xpose.msra.mxu0 0.0
      %1638 = vmatpush.xpose.msra.mxu0 0.0
      %1639 = vmatpush.xpose.msra.mxu0 0.0
      %1640 = vmatpush.xpose.msra.mxu0 0.0
      %1641 = vmatpush.xpose.msra.mxu0 0.0
      %1642 = vmatpush.xpose.msra.mxu0 0.0
      %1643 = vmatpush.xpose.msra.mxu0 0.0
      %1644 = vmatpush.xpose.msra.mxu0 0.0
      %1645 = vmatpush.xpose.msra.mxu0 0.0
      %1646 = vmatpush.xpose.msra.mxu0 0.0
      %1647 = vmatpush.xpose.msra.mxu0 0.0
      %1648 = vmatpush.xpose.msra.mxu0 %v224
      %1649 = vmatmul.f32.gmra.mxu0 %v1631
      %v1650 = vpop.f32.mrf.mxu0
      %v1651 = vadd.f32 0.0, %v1650
      %1652 = vdwg.mxu0
      %1654 = vrot.lane.b32.xlu0 %v1651, 24
      %v1655 = vpop.permute.xlu0 %1654
      %v1657 = vmul.f32 %v1059, %v1655
      %v1658 = vmax.f32 %v1657, 1e-24
      %v1659 = vrsqrt.pop %v1658
      %v1660 = vmul.f32 %v1659, %v1658
      %v1661 = vmul.f32 %v1660, %v1659
      %v1662 = vmul.f32 0.5, %v1661
      %v1663 = vsub.f32 1.5, %v1662
      %v1664 = vmul.f32 %v1659, %v1663
      %vm1665 = vweird.f32 %v1658
      %vm1666 = vweird.f32 %v1659
      %vm1667 = vmor %vm1665, %vm1666
      %v1668 = vsel %vm1667, %v1659, %v1664
      %1670 = vrot.lane.b32.xlu0 %v1668, 104
      %v1671 = vpop.permute.xlu0 %1670
      %v1673 = vmul.f32 %v1624, %v1671
      %1680 = vset.pattern.permute.xlu0 0
      %1681 = vperm.xlu0 %1680, %v1310
      %v1682 = vpop.permute.xlu0 %1681
      %1683 = vset.pattern.permute.xlu0 0
      %1684 = vperm.xlu0 %1683, %v1311
      %v1685 = vpop.permute.xlu0 %1684
      %1686 = vset.pattern.permute.xlu0 0
      %1687 = vperm.xlu0 %1686, %v1312
      %v1688 = vpop.permute.xlu0 %1687
      %1689 = vset.pattern.permute.xlu0 0
      %1690 = vperm.xlu0 %1689, %v1313
      %v1691 = vpop.permute.xlu0 %1690
      %1692 = vset.pattern.permute.xlu0 0
      %1693 = vperm.xlu0 %1692, %v1314
      %v1694 = vpop.permute.xlu0 %1693
      %1695 = vset.pattern.permute.xlu0 0
      %1696 = vperm.xlu0 %1695, %v1315
      %v1697 = vpop.permute.xlu0 %1696
      %v1698 = vperm.slane %v1682, %v964
      %v1699 = vperm.slane %v1685, %v964
      %v1700 = vperm.slane %v1688, %v964
      %v1701 = vperm.slane %v1691, %v964
      %v1702 = vperm.slane %v1694, %v964
      %v1703 = vperm.slane %v1697, %v964
      %v1704 = vsel %vm973, %v1699, %v1698
      %v1705 = vsel %vm975, %v1700, %v1704
      %v1706 = vsel %vm977, %v1701, %v1705
      %v1707 = vsel %vm979, %v1702, %v1706
      %v1708 = vsel %vm981, %v1703, %v1707
      %1711 = vrot.lane.b32.xlu0 %v1597, 16
      %v1712 = vpop.permute.xlu0 %1711
      %1715 = vrot.lane.b32.xlu0 %v1673, 24
      %v1716 = vpop.permute.xlu0 %1715
      %v1718 = vsel %vm237, %v1534, %v1708
      %v1719 = vsel %vm997, %v1718, %v1712
      %v1720 = vsel %vm999, %v1719, %v1716
      %v1721 = vsel %vm1001, %v1720, 0.0
      %1722 = vst [vmem:[%s220] sm:$0x3f] %v1721
      %p1723 = scmp.lt.s32.totalorder %s16, 1
      %s1724 = scalar_select %p1723, %s16, 1
      %s1725 = smul.addr %s1724, 8
      %s1726 = scalar_lea.vmem %s3, %s1725
      %p1727 = scmp.lt.s32.totalorder %s16, 1
      %s1728 = scalar_select %p1727, %s16, 1
      %s1729 = smul.addr %s1728, 8
      %s1730 = scalar_lea.vmem %s4, %s1729
      // Predicated region
      $region33: #{bi_mpm_forward.1} parent=31 // pred_check
        %p1731 = pneg %p107
      $region34: #{bi_mpm_forward.1} parent=31 // pred_check_branch
        %1733 = sbr.rel (%p1731) target = $region36
      $region35: #{bi_mpm_forward.1} parent=31 // pred_region
        _
      $region36: #{bi_mpm_forward.1} parent=31 // pred_fallthru
        _
      // Predicated region
      $region37: #{bi_mpm_forward.1} parent=31 // pred_check
        %p1734 = pneg %p133
      $region38: #{bi_mpm_forward.1} parent=31 // pred_check_branch
        %1736 = sbr.rel (%p1734) target = $region40
      $region39: #{bi_mpm_forward.1} parent=31 // pred_region
        _
      $region40: #{bi_mpm_forward.1} parent=31 // pred_fallthru
        _
    $region32: #{bi_mpm_forward.1} parent=5 // pred_fallthru
      _
    %p1737 = scmp.le.s32.totalorder 2, %s11
    // Predicated region
    $region41: #{bi_mpm_forward.1} parent=5 // pred_check
      %p1738 = pneg %p1737
    $region42: #{bi_mpm_forward.1} parent=5 // pred_check_branch
      %1740 = sbr.rel (%p1738) target = $region44
    $region43: #{bi_mpm_forward.1} parent=5 // pred_region
      %s1741 = ssub.s32 %s11, 2
      // Predicated region
      $region45: #{bi_mpm_forward.1} parent=43 // pred_check
        %p1742 = pneg %p113
      $region46: #{bi_mpm_forward.1} parent=43 // pred_check_branch
        %1744 = sbr.rel (%p1742) target = $region48
      $region47: #{bi_mpm_forward.1} parent=43 // pred_region
        %p1745 = scmp.lt.s32.totalorder %s17, 1
        %s1746 = scalar_select %p1745, %s17, 1
        %s1747 = smul.addr %s1746, 8
        %s1748 = scalar_lea.vmem %s3, %s1747
      $region48: #{bi_mpm_forward.1} parent=43 // pred_fallthru
        _
      // Predicated region
      $region49: #{bi_mpm_forward.1} parent=43 // pred_check
        %p1749 = pneg %p139
      $region50: #{bi_mpm_forward.1} parent=43 // pred_check_branch
        %1751 = sbr.rel (%p1749) target = $region52
      $region51: #{bi_mpm_forward.1} parent=43 // pred_region
        %p1752 = scmp.lt.s32.totalorder %s17, 1
        %s1753 = scalar_select %p1752, %s17, 1
        %s1754 = smul.addr %s1753, 8
        %s1755 = scalar_lea.vmem %s4, %s1754
      $region52: #{bi_mpm_forward.1} parent=43 // pred_fallthru
        _
    $region44: #{bi_mpm_forward.1} parent=5 // pred_fallthru
      _
  $region6: #{bi_mpm_forward.1} parent=0 // loop_footer
    %s15 = sadd.s32 1, %s11
  $region7: #{bi_mpm_forward.1} parent=0 // loop_footer_branch
    %10 = sbr.rel target = $region3
  $region8: #{bi_mpm_forward.1} parent=0 // loop_exit
    _

</llo_original>
